<compile_context>
chip_gen: v6e
topology: v6e:2x2x1
jax: 0.10.0
libtpu: 0.0.40
codegen_flags: <defaults>
</compile_context>

<pallas_src>
import functools

import jax
import jax.numpy as jnp
import numpy as np
from jax.experimental import pallas as pl
from jax.experimental.pallas import tpu as pltpu


def _round_up(n, m):
    return ((n + m - 1) // m) * m


def _elu(x):
    # F.elu with alpha=1.0.  The jnp.where discards the positive branch, so no
    # clamp is needed.  Kept entirely in f32 (v5e-safe).
    # TODO(synk): switch to jnp.expm1 once its Mosaic lowering is confirmed on
    # all target generations (slightly better precision for small negative x).
    return jnp.where(x > 0, x, jnp.exp(x) - 1.0)


def conditioner_kernel(x_ref, w_in_ref, b_in_ref, w_hid_ref, b_hid_ref,
                       w_out_ref, b_out_ref, out_ref, *, n_layers):
    """Full forward pass for one batch tile; weights stay resident in VMEM."""
    mxu_dtype = w_in_ref.dtype            # f32 or bf16 matmul path
    x = x_ref[...]                        # already cast to mxu_dtype in wrapper

    # input layer + ELU (MXU accumulates in f32; elementwise math in f32)
    h = _elu(jnp.dot(x, w_in_ref[...], preferred_element_type=jnp.float32)
             + b_in_ref[...])

    # residual hidden layers; static unroll (n_layers is small & fixed) so the
    # LLO scheduler sees the whole matmul chain.
    for l in range(n_layers):
        z = jnp.dot(h.astype(mxu_dtype), w_hid_ref[l],
                    preferred_element_type=jnp.float32) + b_hid_ref[l]
        h = h + _elu(z)

    # output layer (no activation)
    out = jnp.dot(h.astype(mxu_dtype), w_out_ref[...],
                  preferred_element_type=jnp.float32) + b_out_ref[...]
    out_ref[...] = out.astype(out_ref.dtype)


def _build_call(*, n_layers, tb, batch_pad, in_cols, hid_pad, out_cols,
                out_dtype, vmem_limit, single_buffer_weights):
    """Construct the pallas_call for a given buffering mode."""
    # Weights/biases have constant index maps -> they never need the default
    # double-buffer; single-buffering them halves resident weight VMEM.
    wkw = ({"pipeline_mode": pl.Buffered(1)} if single_buffer_weights else {})
    in_specs = [
        pl.BlockSpec((tb, in_cols), lambda i: (i, 0)),                              # x tile
        pl.BlockSpec((in_cols, hid_pad), lambda i: (0, 0), **wkw),                  # w_in (resident)
        pl.BlockSpec((1, hid_pad), lambda i: (0, 0), **wkw),                        # b_in
        pl.BlockSpec((n_layers, hid_pad, hid_pad), lambda i: (0, 0, 0), **wkw),     # w_hid (resident)
        pl.BlockSpec((n_layers, 1, hid_pad), lambda i: (0, 0, 0), **wkw),           # b_hid
        pl.BlockSpec((hid_pad, out_cols), lambda i: (0, 0), **wkw),                 # w_out (resident)
        pl.BlockSpec((1, out_cols), lambda i: (0, 0), **wkw),                       # b_out
    ]
    return pl.pallas_call(
        functools.partial(conditioner_kernel, n_layers=n_layers),
        out_shape=jax.ShapeDtypeStruct((batch_pad, out_cols), out_dtype),
        grid=(batch_pad // tb,),
        in_specs=in_specs,
        out_specs=pl.BlockSpec((tb, out_cols), lambda i: (i, 0)),
        compiler_params=pltpu.CompilerParams(
            dimension_semantics=("parallel",),    # shard batch grid across TCs (v7x)
            vmem_limit_bytes=vmem_limit,
        ),
    )


def conditioner_forward(x, params, *, n_layers, out_dim, n_params,
                        matmul_dtype=jnp.float32, out_dtype=jnp.float32,
                        block_batch=512):
    """Runs the Pallas kernel; returns the torch.split(..., out_dim, dim=1) tuple."""
    w_in, b_in, w_hid, b_hid, w_out, b_out = params
    batch, in_dim = x.shape
    hidden_dim = w_in.shape[1]
    out_full = out_dim * n_params

    # Feature-dim layout:
    #  * hidden dim is always lane-padded to 128 (matmul K/N stay lane-dense;
    #    zero padding is numerically inert: ELU(0)=0, residual stays 0);
    #  * tiny in_dim / out_full are left unpadded (full-dim blocks are legal) so
    #    the per-step x/out DMA carries only real columns.
    hid_pad = _round_up(hidden_dim, 128)
    in_cols = in_dim if in_dim <= 128 else _round_up(in_dim, 128)
    out_cols = out_full if out_full < 256 else _round_up(out_full, 128)

    # Batch tile: 16-row granularity for bf16 (sublane packing), 8 for f32.
    sub = 16 if jnp.dtype(matmul_dtype) == jnp.bfloat16 else 8
    tb_full = _round_up(batch, sub)
    tb = min(_round_up(block_batch, sub), tb_full)
    # Ensure >= 2 grid steps when the batch allows it so the "parallel" axis
    # can actually shard across v7x's 2 TensorCores.
    if tb >= tb_full and batch > sub:
        tb = _round_up((batch + 1) // 2, sub)
    batch_pad = _round_up(batch, tb)

    def pad2(a, rows, cols, dt):
        return jnp.pad(a, ((0, rows - a.shape[0]),
                           (0, cols - a.shape[1]))).astype(dt)

    x_p = pad2(x, batch_pad, in_cols, matmul_dtype)
    w_in_p = pad2(w_in, in_cols, hid_pad, matmul_dtype)
    b_in_p = pad2(b_in, 1, hid_pad, jnp.float32)
    w_hid_p = jnp.pad(w_hid, ((0, 0), (0, hid_pad - hidden_dim),
                              (0, hid_pad - hidden_dim))).astype(matmul_dtype)
    b_hid_p = jnp.pad(b_hid, ((0, 0), (0, 0),
                              (0, hid_pad - hidden_dim))).astype(jnp.float32)
    w_out_p = pad2(w_out, hid_pad, out_cols, matmul_dtype)
    b_out_p = pad2(b_out, 1, out_cols, jnp.float32)

    args = (x_p, w_in_p, b_in_p, w_hid_p, b_hid_p, w_out_p, b_out_p)

    # Scoped-VMEM budget: derived from actual buffer sizes with margin, clamped
    # below the physical per-core capacity (64 MiB on v7x, 128 MiB v5e/v6e).
    def est_bytes(single_buffer_weights):
        wb = jnp.dtype(matmul_dtype).itemsize
        ob = jnp.dtype(out_dtype).itemsize
        wcopies = 1 if single_buffer_weights else 2
        weights = (in_cols * hid_pad + n_layers * hid_pad * hid_pad
                   + hid_pad * out_cols) * wb
        biases = 4 * ((n_layers + 1) * hid_pad + out_cols)
        tiles = 2 * tb * (in_cols * wb + out_cols * ob)    # double-buffered x/out
        live = 3 * tb * hid_pad * 4                        # f32 h/z temporaries
        return wcopies * (weights + biases) + tiles + live

    def vmem_limit(single_buffer_weights):
        cap = 64 * 1024 * 1024
        try:
            cap = int(pltpu.get_tpu_info().vmem_capacity_bytes)
        except Exception:
            pass
        ceiling = (cap * 7) // 8                           # compiler headroom
        want = max(32 * 1024 * 1024, 2 * est_bytes(single_buffer_weights))
        return min(want, ceiling)

    call_kwargs = dict(n_layers=n_layers, tb=tb, batch_pad=batch_pad,
                       in_cols=in_cols, hid_pad=hid_pad, out_cols=out_cols,
                       out_dtype=out_dtype)
    try:
        full_out = _build_call(single_buffer_weights=True,
                               vmem_limit=vmem_limit(True),
                               **call_kwargs)(*args)
    except Exception:
        # Fallback: default (double) buffering if Buffered(1) is rejected.
        full_out = _build_call(single_buffer_weights=False,
                               vmem_limit=vmem_limit(False),
                               **call_kwargs)(*args)

    out = full_out[:batch, :out_full]
    return tuple(jnp.split(out, n_params, axis=1))


def init_params(key, in_dim, hidden_dim, out_dim, n_layers, n_params):
    """Mimics PyTorch nn.Linear default init U(-1/sqrt(fan_in), 1/sqrt(fan_in)).
    Weights are stored transposed: [in_features, out_features]."""
    def linear(k, fan_in, fan_out):
        kw, kb = jax.random.split(k)
        bound = 1.0 / np.sqrt(fan_in)
        w = jax.random.uniform(kw, (fan_in, fan_out), jnp.float32, -bound, bound)
        b = jax.random.uniform(kb, (1, fan_out), jnp.float32, -bound, bound)
        return w, b

    keys = jax.random.split(key, n_layers + 2)
    w_in, b_in = linear(keys[0], in_dim, hidden_dim)
    hw, hb = [], []
    for l in range(n_layers):
        w, b = linear(keys[1 + l], hidden_dim, hidden_dim)
        hw.append(w)
        hb.append(b)
    w_hid = jnp.stack(hw, axis=0)          # (n_layers, hidden, hidden)
    b_hid = jnp.stack(hb, axis=0)          # (n_layers, 1, hidden)
    w_out, b_out = linear(keys[-1], hidden_dim, out_dim * n_params)
    return (w_in, b_in, w_hid, b_hid, w_out, b_out)


def reference_forward(x, params, *, n_layers, out_dim, n_params):
    """Pure-JAX reference mirroring the PyTorch module (f32 everywhere)."""
    w_in, b_in, w_hid, b_hid, w_out, b_out = params
    h = _elu(x @ w_in + b_in)
    for l in range(n_layers):
        h = h + _elu(h @ w_hid[l] + b_hid[l])
    out = h @ w_out + b_out
    return tuple(jnp.split(out, n_params, axis=1))


if __name__ == "__main__":
    # Small shapes consistent with the module's forward.
    batch, in_dim, hidden_dim, out_dim = 16, 4, 32, 4
    n_layers, n_params = 2, 2

    key = jax.random.PRNGKey(0)
    k_x, k_p = jax.random.split(key)
    x = jax.random.normal(k_x, (batch, in_dim), dtype=jnp.float32)
    params = init_params(k_p, in_dim, hidden_dim, out_dim, n_layers, n_params)

    refs = reference_forward(x, params, n_layers=n_layers,
                             out_dim=out_dim, n_params=n_params)

    # f32 MXU path (default block_batch; small-batch logic forces a 2-step grid).
    outs = conditioner_forward(x, params, n_layers=n_layers, out_dim=out_dim,
                               n_params=n_params, matmul_dtype=jnp.float32)
    outs = jax.block_until_ready(outs)
    for o, r in zip(outs, refs):
        assert o.shape == (batch, out_dim)
        np.testing.assert_allclose(np.asarray(o), np.asarray(r),
                                   rtol=1e-5, atol=1e-5)

    # bf16 MXU path (production perf setting: half the weight VMEM / 2x MXU rate).
    outs_bf16 = conditioner_forward(x, params, n_layers=n_layers, out_dim=out_dim,
                                    n_params=n_params, matmul_dtype=jnp.bfloat16)
    outs_bf16 = jax.block_until_ready(outs_bf16)
    for o, r in zip(outs_bf16, refs):
        assert o.shape == (batch, out_dim)
        np.testing.assert_allclose(np.asarray(o), np.asarray(r),
                                   rtol=5e-2, atol=5e-2)

    print("KERNEL_OK")
</pallas_src>

<mosaic_0001>
module attributes {stable_mosaic.version = 11 : i64} {
  func.func @conditioner_kernel(%arg0: i32, %arg1: memref<8x4xf32, #tpu.memory_space<vmem>>, %arg2: memref<4x128xf32, #tpu.memory_space<vmem>>, %arg3: memref<1x128xf32, #tpu.memory_space<vmem>>, %arg4: memref<2x128x128xf32, #tpu.memory_space<vmem>>, %arg5: memref<2x1x128xf32, #tpu.memory_space<vmem>>, %arg6: memref<128x8xf32, #tpu.memory_space<vmem>>, %arg7: memref<1x8xf32, #tpu.memory_space<vmem>>, %arg8: memref<8x8xf32, #tpu.memory_space<vmem>>) attributes {dimension_semantics = [#tpu.dimension_semantics<parallel>], iteration_bounds = array<i64: 2>, scalar_prefetch = 0 : i64, scratch_operands = 0 : i64, tpu.core_type = #tpu.core_type<tc>, window_params = [{transform_indices = @transform_0, window_bounds = array<i64: 8, 4>}, {pipeline_mode = #tpu.pipeline_mode<synchronous>, transform_indices = @transform_1, window_bounds = array<i64: 4, 128>}, {pipeline_mode = #tpu.pipeline_mode<synchronous>, transform_indices = @transform_2, window_bounds = array<i64: 1, 128>}, {pipeline_mode = #tpu.pipeline_mode<synchronous>, transform_indices = @transform_3, window_bounds = array<i64: 2, 128, 128>}, {pipeline_mode = #tpu.pipeline_mode<synchronous>, transform_indices = @transform_4, window_bounds = array<i64: 2, 1, 128>}, {pipeline_mode = #tpu.pipeline_mode<synchronous>, transform_indices = @transform_5, window_bounds = array<i64: 128, 8>}, {pipeline_mode = #tpu.pipeline_mode<synchronous>, transform_indices = @transform_6, window_bounds = array<i64: 1, 8>}, {transform_indices = @transform_7, window_bounds = array<i64: 8, 8>}]} {
    %c0 = arith.constant 0 : index
    %c0_0 = arith.constant 0 : index
    %0 = vector.load %arg1[%c0, %c0_0] : memref<8x4xf32, #tpu.memory_space<vmem>>, vector<8x4xf32>
    %c0_1 = arith.constant 0 : index
    %c0_2 = arith.constant 0 : index
    %1 = vector.load %arg2[%c0_1, %c0_2] : memref<4x128xf32, #tpu.memory_space<vmem>>, vector<4x128xf32>
    %cst = arith.constant dense<0.000000e+00> : vector<8x128xf32>
    %2 = tpu.matmul %0, %1, %cst {dimension_numbers = #tpu.dot_dimension_numbers<[1], [0], [0], [1], [0, 0, 1, 1], [], []>} : vector<8x4xf32>, vector<4x128xf32>, vector<8x128xf32> -> vector<8x128xf32>
    %c0_3 = arith.constant 0 : index
    %c0_4 = arith.constant 0 : index
    %3 = vector.load %arg3[%c0_3, %c0_4] : memref<1x128xf32, #tpu.memory_space<vmem>>, vector<1x128xf32>
    %4 = vector.broadcast %3 : vector<1x128xf32> to vector<8x128xf32>
    %5 = arith.addf %2, %4 : vector<8x128xf32>
    %cst_5 = arith.constant 0.000000e+00 : f32
    %6 = vector.broadcast %cst_5 : f32 to vector<8x128xf32>
    %7 = arith.cmpf ogt, %5, %6 : vector<8x128xf32>
    %8 = math.exp %5 : vector<8x128xf32>
    %cst_6 = arith.constant 1.000000e+00 : f32
    %9 = vector.broadcast %cst_6 : f32 to vector<8x128xf32>
    %10 = arith.subf %8, %9 : vector<8x128xf32>
    %11 = arith.select %7, %5, %10 : vector<8x128xi1>, vector<8x128xf32>
    %c0_7 = arith.constant 0 : index
    %c0_8 = arith.constant 0 : index
    %c0_9 = arith.constant 0 : index
    %12 = vector.load %arg4[%c0_7, %c0_8, %c0_9] : memref<2x128x128xf32, #tpu.memory_space<vmem>>, vector<1x128x128xf32>
    %13 = vector.shape_cast %12 : vector<1x128x128xf32> to vector<128x128xf32>
    %cst_10 = arith.constant dense<0.000000e+00> : vector<8x128xf32>
    %14 = tpu.matmul %11, %13, %cst_10 {dimension_numbers = #tpu.dot_dimension_numbers<[1], [0], [0], [1], [0, 0, 1, 1], [], []>} : vector<8x128xf32>, vector<128x128xf32>, vector<8x128xf32> -> vector<8x128xf32>
    %c0_11 = arith.constant 0 : index
    %c0_12 = arith.constant 0 : index
    %c0_13 = arith.constant 0 : index
    %15 = vector.load %arg5[%c0_11, %c0_12, %c0_13] : memref<2x1x128xf32, #tpu.memory_space<vmem>>, vector<1x1x128xf32>
    %16 = vector.shape_cast %15 : vector<1x1x128xf32> to vector<1x128xf32>
    %17 = vector.broadcast %16 : vector<1x128xf32> to vector<8x128xf32>
    %18 = arith.addf %14, %17 : vector<8x128xf32>
    %cst_14 = arith.constant 0.000000e+00 : f32
    %19 = vector.broadcast %cst_14 : f32 to vector<8x128xf32>
    %20 = arith.cmpf ogt, %18, %19 : vector<8x128xf32>
    %21 = math.exp %18 : vector<8x128xf32>
    %cst_15 = arith.constant 1.000000e+00 : f32
    %22 = vector.broadcast %cst_15 : f32 to vector<8x128xf32>
    %23 = arith.subf %21, %22 : vector<8x128xf32>
    %24 = arith.select %20, %18, %23 : vector<8x128xi1>, vector<8x128xf32>
    %25 = arith.addf %11, %24 : vector<8x128xf32>
    %c1 = arith.constant 1 : index
    %c0_16 = arith.constant 0 : index
    %c0_17 = arith.constant 0 : index
    %26 = vector.load %arg4[%c1, %c0_16, %c0_17] : memref<2x128x128xf32, #tpu.memory_space<vmem>>, vector<1x128x128xf32>
    %27 = vector.shape_cast %26 : vector<1x128x128xf32> to vector<128x128xf32>
    %cst_18 = arith.constant dense<0.000000e+00> : vector<8x128xf32>
    %28 = tpu.matmul %25, %27, %cst_18 {dimension_numbers = #tpu.dot_dimension_numbers<[1], [0], [0], [1], [0, 0, 1, 1], [], []>} : vector<8x128xf32>, vector<128x128xf32>, vector<8x128xf32> -> vector<8x128xf32>
    %c1_19 = arith.constant 1 : index
    %c0_20 = arith.constant 0 : index
    %c0_21 = arith.constant 0 : index
    %29 = vector.load %arg5[%c1_19, %c0_20, %c0_21] : memref<2x1x128xf32, #tpu.memory_space<vmem>>, vector<1x1x128xf32>
    %30 = vector.shape_cast %29 : vector<1x1x128xf32> to vector<1x128xf32>
    %31 = vector.broadcast %30 : vector<1x128xf32> to vector<8x128xf32>
    %32 = arith.addf %28, %31 : vector<8x128xf32>
    %cst_22 = arith.constant 0.000000e+00 : f32
    %33 = vector.broadcast %cst_22 : f32 to vector<8x128xf32>
    %34 = arith.cmpf ogt, %32, %33 : vector<8x128xf32>
    %35 = math.exp %32 : vector<8x128xf32>
    %cst_23 = arith.constant 1.000000e+00 : f32
    %36 = vector.broadcast %cst_23 : f32 to vector<8x128xf32>
    %37 = arith.subf %35, %36 : vector<8x128xf32>
    %38 = arith.select %34, %32, %37 : vector<8x128xi1>, vector<8x128xf32>
    %39 = arith.addf %25, %38 : vector<8x128xf32>
    %c0_24 = arith.constant 0 : index
    %c0_25 = arith.constant 0 : index
    %40 = vector.load %arg6[%c0_24, %c0_25] : memref<128x8xf32, #tpu.memory_space<vmem>>, vector<128x8xf32>
    %cst_26 = arith.constant dense<0.000000e+00> : vector<8x8xf32>
    %41 = tpu.matmul %39, %40, %cst_26 {dimension_numbers = #tpu.dot_dimension_numbers<[1], [0], [0], [1], [0, 0, 1, 1], [], []>} : vector<8x128xf32>, vector<128x8xf32>, vector<8x8xf32> -> vector<8x8xf32>
    %c0_27 = arith.constant 0 : index
    %c0_28 = arith.constant 0 : index
    %42 = vector.load %arg7[%c0_27, %c0_28] : memref<1x8xf32, #tpu.memory_space<vmem>>, vector<1x8xf32>
    %43 = vector.broadcast %42 : vector<1x8xf32> to vector<8x8xf32>
    %44 = arith.addf %41, %43 : vector<8x8xf32>
    %c0_29 = arith.constant 0 : index
    %c0_30 = arith.constant 0 : index
    %45 = vector.load %arg8[%c0_29, %c0_30] : memref<8x8xf32, #tpu.memory_space<vmem>>, vector<8x8xf32>
    tpu.vector_store %arg8[%c0_29, %c0_30], %44 {strides = array<i32>} : memref<8x8xf32, #tpu.memory_space<vmem>>, vector<8x8xf32>,
    return
  }
  func.func @transform_0(%arg0: i32) -> (i32, i32) {
    %c0_i32 = arith.constant 0 : i32
    %c0_i32_0 = arith.constant 0 : i32
    return %arg0, %c0_i32 : i32, i32
  }
  func.func @transform_1(%arg0: i32) -> (i32, i32) {
    %c0_i32 = arith.constant 0 : i32
    %c0_i32_0 = arith.constant 0 : i32
    %c0_i32_1 = arith.constant 0 : i32
    return %c0_i32, %c0_i32_0 : i32, i32
  }
  func.func @transform_2(%arg0: i32) -> (i32, i32) {
    %c0_i32 = arith.constant 0 : i32
    %c0_i32_0 = arith.constant 0 : i32
    %c0_i32_1 = arith.constant 0 : i32
    return %c0_i32, %c0_i32_0 : i32, i32
  }
  func.func @transform_3(%arg0: i32) -> (i32, i32, i32) {
    %c0_i32 = arith.constant 0 : i32
    %c0_i32_0 = arith.constant 0 : i32
    %c0_i32_1 = arith.constant 0 : i32
    %c0_i32_2 = arith.constant 0 : i32
    return %c0_i32, %c0_i32_0, %c0_i32_1 : i32, i32, i32
  }
  func.func @transform_4(%arg0: i32) -> (i32, i32, i32) {
    %c0_i32 = arith.constant 0 : i32
    %c0_i32_0 = arith.constant 0 : i32
    %c0_i32_1 = arith.constant 0 : i32
    %c0_i32_2 = arith.constant 0 : i32
    return %c0_i32, %c0_i32_0, %c0_i32_1 : i32, i32, i32
  }
  func.func @transform_5(%arg0: i32) -> (i32, i32) {
    %c0_i32 = arith.constant 0 : i32
    %c0_i32_0 = arith.constant 0 : i32
    %c0_i32_1 = arith.constant 0 : i32
    return %c0_i32, %c0_i32_0 : i32, i32
  }
  func.func @transform_6(%arg0: i32) -> (i32, i32) {
    %c0_i32 = arith.constant 0 : i32
    %c0_i32_0 = arith.constant 0 : i32
    %c0_i32_1 = arith.constant 0 : i32
    return %c0_i32, %c0_i32_0 : i32, i32
  }
  func.func @transform_7(%arg0: i32) -> (i32, i32) {
    %c0_i32 = arith.constant 0 : i32
    %c0_i32_0 = arith.constant 0 : i32
    return %arg0, %c0_i32 : i32, i32
  }
}

module attributes {stable_mosaic.version = 11 : i64} {
  func.func @conditioner_kernel(%arg0: i32, %arg1: memref<8x4xf32, #tpu.memory_space<vmem>>, %arg2: memref<4x128xf32, #tpu.memory_space<vmem>>, %arg3: memref<1x128xf32, #tpu.memory_space<vmem>>, %arg4: memref<2x128x128xf32, #tpu.memory_space<vmem>>, %arg5: memref<2x1x128xf32, #tpu.memory_space<vmem>>, %arg6: memref<128x8xf32, #tpu.memory_space<vmem>>, %arg7: memref<1x8xf32, #tpu.memory_space<vmem>>, %arg8: memref<8x8xf32, #tpu.memory_space<vmem>>) attributes {dimension_semantics = [#tpu.dimension_semantics<parallel>], iteration_bounds = array<i64: 2>, scalar_prefetch = 0 : i64, scratch_operands = 0 : i64, tpu.core_type = #tpu.core_type<tc>, window_params = [{transform_indices = @transform_0, window_bounds = array<i64: 8, 4>}, {pipeline_mode = #tpu.pipeline_mode<synchronous>, transform_indices = @transform_1, window_bounds = array<i64: 4, 128>}, {pipeline_mode = #tpu.pipeline_mode<synchronous>, transform_indices = @transform_2, window_bounds = array<i64: 1, 128>}, {pipeline_mode = #tpu.pipeline_mode<synchronous>, transform_indices = @transform_3, window_bounds = array<i64: 2, 128, 128>}, {pipeline_mode = #tpu.pipeline_mode<synchronous>, transform_indices = @transform_4, window_bounds = array<i64: 2, 1, 128>}, {pipeline_mode = #tpu.pipeline_mode<synchronous>, transform_indices = @transform_5, window_bounds = array<i64: 128, 8>}, {pipeline_mode = #tpu.pipeline_mode<synchronous>, transform_indices = @transform_6, window_bounds = array<i64: 1, 8>}, {transform_indices = @transform_7, window_bounds = array<i64: 8, 8>}]} {
    %c0 = arith.constant 0 : index
    %c0_0 = arith.constant 0 : index
    %0 = vector.load %arg1[%c0, %c0_0] : memref<8x4xf32, #tpu.memory_space<vmem>>, vector<8x4xf32>
    %c0_1 = arith.constant 0 : index
    %c0_2 = arith.constant 0 : index
    %1 = vector.load %arg2[%c0_1, %c0_2] : memref<4x128xf32, #tpu.memory_space<vmem>>, vector<4x128xf32>
    %cst = arith.constant dense<0.000000e+00> : vector<8x128xf32>
    %2 = tpu.matmul %0, %1, %cst {dimension_numbers = #tpu.dot_dimension_numbers<[1], [0], [0], [1], [0, 0, 1, 1], [], []>} : vector<8x4xf32>, vector<4x128xf32>, vector<8x128xf32> -> vector<8x128xf32>
    %c0_3 = arith.constant 0 : index
    %c0_4 = arith.constant 0 : index
    %3 = vector.load %arg3[%c0_3, %c0_4] : memref<1x128xf32, #tpu.memory_space<vmem>>, vector<1x128xf32>
    %4 = vector.broadcast %3 : vector<1x128xf32> to vector<8x128xf32>
    %5 = arith.addf %2, %4 : vector<8x128xf32>
    %cst_5 = arith.constant 0.000000e+00 : f32
    %6 = vector.broadcast %cst_5 : f32 to vector<8x128xf32>
    %7 = arith.cmpf ogt, %5, %6 : vector<8x128xf32>
    %8 = math.exp %5 : vector<8x128xf32>
    %cst_6 = arith.constant 1.000000e+00 : f32
    %9 = vector.broadcast %cst_6 : f32 to vector<8x128xf32>
    %10 = arith.subf %8, %9 : vector<8x128xf32>
    %11 = arith.select %7, %5, %10 : vector<8x128xi1>, vector<8x128xf32>
    %c0_7 = arith.constant 0 : index
    %c0_8 = arith.constant 0 : index
    %c0_9 = arith.constant 0 : index
    %12 = vector.load %arg4[%c0_7, %c0_8, %c0_9] : memref<2x128x128xf32, #tpu.memory_space<vmem>>, vector<1x128x128xf32>
    %13 = vector.shape_cast %12 : vector<1x128x128xf32> to vector<128x128xf32>
    %cst_10 = arith.constant dense<0.000000e+00> : vector<8x128xf32>
    %14 = tpu.matmul %11, %13, %cst_10 {dimension_numbers = #tpu.dot_dimension_numbers<[1], [0], [0], [1], [0, 0, 1, 1], [], []>} : vector<8x128xf32>, vector<128x128xf32>, vector<8x128xf32> -> vector<8x128xf32>
    %c0_11 = arith.constant 0 : index
    %c0_12 = arith.constant 0 : index
    %c0_13 = arith.constant 0 : index
    %15 = vector.load %arg5[%c0_11, %c0_12, %c0_13] : memref<2x1x128xf32, #tpu.memory_space<vmem>>, vector<1x1x128xf32>
    %16 = vector.shape_cast %15 : vector<1x1x128xf32> to vector<1x128xf32>
    %17 = vector.broadcast %16 : vector<1x128xf32> to vector<8x128xf32>
    %18 = arith.addf %14, %17 : vector<8x128xf32>
    %cst_14 = arith.constant 0.000000e+00 : f32
    %19 = vector.broadcast %cst_14 : f32 to vector<8x128xf32>
    %20 = arith.cmpf ogt, %18, %19 : vector<8x128xf32>
    %21 = math.exp %18 : vector<8x128xf32>
    %cst_15 = arith.constant 1.000000e+00 : f32
    %22 = vector.broadcast %cst_15 : f32 to vector<8x128xf32>
    %23 = arith.subf %21, %22 : vector<8x128xf32>
    %24 = arith.select %20, %18, %23 : vector<8x128xi1>, vector<8x128xf32>
    %25 = arith.addf %11, %24 : vector<8x128xf32>
    %c1 = arith.constant 1 : index
    %c0_16 = arith.constant 0 : index
    %c0_17 = arith.constant 0 : index
    %26 = vector.load %arg4[%c1, %c0_16, %c0_17] : memref<2x128x128xf32, #tpu.memory_space<vmem>>, vector<1x128x128xf32>
    %27 = vector.shape_cast %26 : vector<1x128x128xf32> to vector<128x128xf32>
    %cst_18 = arith.constant dense<0.000000e+00> : vector<8x128xf32>
    %28 = tpu.matmul %25, %27, %cst_18 {dimension_numbers = #tpu.dot_dimension_numbers<[1], [0], [0], [1], [0, 0, 1, 1], [], []>} : vector<8x128xf32>, vector<128x128xf32>, vector<8x128xf32> -> vector<8x128xf32>
    %c1_19 = arith.constant 1 : index
    %c0_20 = arith.constant 0 : index
    %c0_21 = arith.constant 0 : index
    %29 = vector.load %arg5[%c1_19, %c0_20, %c0_21] : memref<2x1x128xf32, #tpu.memory_space<vmem>>, vector<1x1x128xf32>
    %30 = vector.shape_cast %29 : vector<1x1x128xf32> to vector<1x128xf32>
    %31 = vector.broadcast %30 : vector<1x128xf32> to vector<8x128xf32>
    %32 = arith.addf %28, %31 : vector<8x128xf32>
    %cst_22 = arith.constant 0.000000e+00 : f32
    %33 = vector.broadcast %cst_22 : f32 to vector<8x128xf32>
    %34 = arith.cmpf ogt, %32, %33 : vector<8x128xf32>
    %35 = math.exp %32 : vector<8x128xf32>
    %cst_23 = arith.constant 1.000000e+00 : f32
    %36 = vector.broadcast %cst_23 : f32 to vector<8x128xf32>
    %37 = arith.subf %35, %36 : vector<8x128xf32>
    %38 = arith.select %34, %32, %37 : vector<8x128xi1>, vector<8x128xf32>
    %39 = arith.addf %25, %38 : vector<8x128xf32>
    %c0_24 = arith.constant 0 : index
    %c0_25 = arith.constant 0 : index
    %40 = vector.load %arg6[%c0_24, %c0_25] : memref<128x8xf32, #tpu.memory_space<vmem>>, vector<128x8xf32>
    %cst_26 = arith.constant dense<0.000000e+00> : vector<8x8xf32>
    %41 = tpu.matmul %39, %40, %cst_26 {dimension_numbers = #tpu.dot_dimension_numbers<[1], [0], [0], [1], [0, 0, 1, 1], [], []>} : vector<8x128xf32>, vector<128x8xf32>, vector<8x8xf32> -> vector<8x8xf32>
    %c0_27 = arith.constant 0 : index
    %c0_28 = arith.constant 0 : index
    %42 = vector.load %arg7[%c0_27, %c0_28] : memref<1x8xf32, #tpu.memory_space<vmem>>, vector<1x8xf32>
    %43 = vector.broadcast %42 : vector<1x8xf32> to vector<8x8xf32>
    %44 = arith.addf %41, %43 : vector<8x8xf32>
    %c0_29 = arith.constant 0 : index
    %c0_30 = arith.constant 0 : index
    %45 = vector.load %arg8[%c0_29, %c0_30] : memref<8x8xf32, #tpu.memory_space<vmem>>, vector<8x8xf32>
    tpu.vector_store %arg8[%c0_29, %c0_30], %44 {strides = array<i32>} : memref<8x8xf32, #tpu.memory_space<vmem>>, vector<8x8xf32>,
    return
  }
  func.func @transform_0(%arg0: i32) -> (i32, i32) {
    %c0_i32 = arith.constant 0 : i32
    %c0_i32_0 = arith.constant 0 : i32
    return %arg0, %c0_i32 : i32, i32
  }
  func.func @transform_1(%arg0: i32) -> (i32, i32) {
    %c0_i32 = arith.constant 0 : i32
    %c0_i32_0 = arith.constant 0 : i32
    %c0_i32_1 = arith.constant 0 : i32
    return %c0_i32, %c0_i32_0 : i32, i32
  }
  func.func @transform_2(%arg0: i32) -> (i32, i32) {
    %c0_i32 = arith.constant 0 : i32
    %c0_i32_0 = arith.constant 0 : i32
    %c0_i32_1 = arith.constant 0 : i32
    return %c0_i32, %c0_i32_0 : i32, i32
  }
  func.func @transform_3(%arg0: i32) -> (i32, i32, i32) {
    %c0_i32 = arith.constant 0 : i32
    %c0_i32_0 = arith.constant 0 : i32
    %c0_i32_1 = arith.constant 0 : i32
    %c0_i32_2 = arith.constant 0 : i32
    return %c0_i32, %c0_i32_0, %c0_i32_1 : i32, i32, i32
  }
  func.func @transform_4(%arg0: i32) -> (i32, i32, i32) {
    %c0_i32 = arith.constant 0 : i32
    %c0_i32_0 = arith.constant 0 : i32
    %c0_i32_1 = arith.constant 0 : i32
    %c0_i32_2 = arith.constant 0 : i32
    return %c0_i32, %c0_i32_0, %c0_i32_1 : i32, i32, i32
  }
  func.func @transform_5(%arg0: i32) -> (i32, i32) {
    %c0_i32 = arith.constant 0 : i32
    %c0_i32_0 = arith.constant 0 : i32
    %c0_i32_1 = arith.constant 0 : i32
    return %c0_i32, %c0_i32_0 : i32, i32
  }
  func.func @transform_6(%arg0: i32) -> (i32, i32) {
    %c0_i32 = arith.constant 0 : i32
    %c0_i32_0 = arith.constant 0 : i32
    %c0_i32_1 = arith.constant 0 : i32
    return %c0_i32, %c0_i32_0 : i32, i32
  }
  func.func @transform_7(%arg0: i32) -> (i32, i32) {
    %c0_i32 = arith.constant 0 : i32
    %c0_i32_0 = arith.constant 0 : i32
    return %arg0, %c0_i32 : i32, i32
  }
}

</mosaic_0001>

<llo_original>
// kernel: tpu_custom_call.1
$region0: #{tpu_custom_call.1}
  #allocation0 [shape = 'u32[]', space=smem, size = 0x4, offset = 0x4, fixed_abs, tag = 'smem constant byte address 0x4 - core index']
  #allocation1 [shape = 'u32[144,128]{1,0:T(1,128)}', space=vmem, size = 0x12000, scoped, tag = 'internal scratch']
  %s0 = inlined_call_operand.vmem [shape: f32[16,4], index: 0, kind: input, shape index: {}]
  %s1 = inlined_call_operand.vmem [shape: f32[4,128], index: 1, kind: input, shape index: {}]
  %s2 = inlined_call_operand.vmem [shape: f32[1,128], index: 2, kind: input, shape index: {}]
  %s3 = inlined_call_operand.hbm [shape: f32[2,128,128], index: 3, kind: input, shape index: {}]
  %s4 = inlined_call_operand.vmem [shape: f32[2,1,128], index: 4, kind: input, shape index: {}]
  %s5 = inlined_call_operand.vmem [shape: f32[128,8], index: 5, kind: input, shape index: {}]
  %s6 = inlined_call_operand.vmem [shape: f32[1,8], index: 6, kind: input, shape index: {}]
  %s7 = inlined_call_operand.vmem [shape: f32[16,8], index: 7, kind: output, shape index: {}]
  %s8 = sld [smem:[#allocation0]]
  $region65: #{tpu_custom_call.1} parent=0
    _
  %s10 = ssub.s32 1, %s8
  %s11 = scalar_select 0, %s10, %s8
  $region1: #{tpu_custom_call.1} parent=0
    #allocation2 [shape = 'u8[131072]{0}', space=vmem, size = 0x20000, scoped, tag = 'input window, operand 3, single buffered']
    #allocation3 [shape = 's32[2]{0}', space=sflag, size = 0x8, scoped, tag = 'scoped memory for tpu_custom_call.1']
    %12 = vsyncpa [#allocation3], 0
    loop: start=0, step=1, limit=4
    $region2: #{tpu_custom_call.1} parent=1 // loop_pre_header
      _
    $region3: #{tpu_custom_call.1} parent=1 // loop_header
      %s14 = sphi 0, %s18
      %p15 = scmp.ge.s32.totalorder %s14, 4
      %s24 = sphi 0, %s26
      %s27 = sphi 0, %s24
      %s28 = sphi 0, %s27
      %s44 = sphi 0, %s28
      %s48 = sphi 0, %s48
      %s50 = sphi 0, %s48
      %s51 = sphi 0, %s50
      %s65 = sphi 0, %s51
      %s69 = sphi 0, %s69
      %s71 = sphi 0, %s69
      %s72 = sphi 0, %s71
      %s86 = sphi 0, %s72
      %s90 = sphi 0, %s90
      %s92 = sphi 0, %s90
      %s93 = sphi 0, %s92
      %s107 = sphi 0, %s93
      %s111 = sphi 0, %s111
      %s113 = sphi 0, %s111
      %s114 = sphi 0, %s113
      %s128 = sphi 0, %s114
      %s132 = sphi 0, %s132
      %s134 = sphi 0, %s132
      %s135 = sphi 0, %s134
      %s149 = sphi 0, %s135
      %s153 = sphi 0, %s153
      %s155 = sphi 0, %s153
      %s156 = sphi 0, %s155
      %s170 = sphi 0, %s156
      %s176 = sphi 0, %s178
      %s179 = sphi 0, %s176
      %s180 = sphi 0, %s179
      %s196 = sphi 0, %s180
    $region4: #{tpu_custom_call.1} parent=1 // loop_header_branch
      %17 = sbr.rel (%p15) target = $region8
    $region5: #{tpu_custom_call.1} parent=1 // loop_body
      %s19 = ssub.s32 %s14, 1
      %s20 = ssub.s32 %s14, 2
      %s21 = sadd.s32 %s14, 1
      %s22 = ssub.s32 %s14, %s21
      %p23 = scmp.eq.s32.totalorder %s22, 0
      %s25 = sadd.s32 %s24, 1
      %s26 = scalar_select %p23, %s24, %s25
      %p29 = pneg %p23
      %p30 = scmp.eq.s32.totalorder %s14, 1
      %p31 = por %p29, %p30
      %p32 = scmp.ne.s32.totalorder %s24, %s27
      %p33 = scmp.eq.s32.totalorder %s14, 0
      %p34 = por %p32, %p33
      %p35 = scmp.ne.s32.totalorder %s24, %s27
      %p36 = scmp.eq.s32.totalorder %s19, 1
      %p37 = por %p35, %p36
      %p38 = scmp.ne.s32.totalorder %s27, %s28
      %p39 = scmp.eq.s32.totalorder %s19, 0
      %p40 = por %p38, %p39
      %p41 = scmp.ne.s32.totalorder %s27, %s28
      %p42 = scmp.eq.s32.totalorder %s20, 1
      %p43 = por %p41, %p42
      %p45 = scmp.ne.s32.totalorder %s28, %s44
      %p46 = scmp.eq.s32.totalorder %s20, 0
      %p47 = por %p45, %p46
      %s49 = sadd.s32 %s48, 1
      %p52 = scmp.eq.s32.totalorder %s14, 1
      %p53 = scmp.ne.s32.totalorder %s48, %s50
      %p54 = scmp.eq.s32.totalorder %s14, 0
      %p55 = por %p53, %p54
      %p56 = scmp.ne.s32.totalorder %s48, %s50
      %p57 = scmp.eq.s32.totalorder %s19, 1
      %p58 = por %p56, %p57
      %p59 = scmp.ne.s32.totalorder %s50, %s51
      %p60 = scmp.eq.s32.totalorder %s19, 0
      %p61 = por %p59, %p60
      %p62 = scmp.ne.s32.totalorder %s50, %s51
      %p63 = scmp.eq.s32.totalorder %s20, 1
      %p64 = por %p62, %p63
      %p66 = scmp.ne.s32.totalorder %s51, %s65
      %p67 = scmp.eq.s32.totalorder %s20, 0
      %p68 = por %p66, %p67
      %s70 = sadd.s32 %s69, 1
      %p73 = scmp.eq.s32.totalorder %s14, 1
      %p74 = scmp.ne.s32.totalorder %s69, %s71
      %p75 = scmp.eq.s32.totalorder %s14, 0
      %p76 = por %p74, %p75
      %p77 = scmp.ne.s32.totalorder %s69, %s71
      %p78 = scmp.eq.s32.totalorder %s19, 1
      %p79 = por %p77, %p78
      %p80 = scmp.ne.s32.totalorder %s71, %s72
      %p81 = scmp.eq.s32.totalorder %s19, 0
      %p82 = por %p80, %p81
      %p83 = scmp.ne.s32.totalorder %s71, %s72
      %p84 = scmp.eq.s32.totalorder %s20, 1
      %p85 = por %p83, %p84
      %p87 = scmp.ne.s32.totalorder %s72, %s86
      %p88 = scmp.eq.s32.totalorder %s20, 0
      %p89 = por %p87, %p88
      %s91 = sadd.s32 %s90, 1
      %p94 = scmp.eq.s32.totalorder %s14, 1
      %p95 = scmp.ne.s32.totalorder %s90, %s92
      %p96 = scmp.eq.s32.totalorder %s14, 0
      %p97 = por %p95, %p96
      %p98 = scmp.ne.s32.totalorder %s90, %s92
      %p99 = scmp.eq.s32.totalorder %s19, 1
      %p100 = por %p98, %p99
      %p101 = scmp.ne.s32.totalorder %s92, %s93
      %p102 = scmp.eq.s32.totalorder %s19, 0
      %p103 = por %p101, %p102
      %p104 = scmp.ne.s32.totalorder %s92, %s93
      %p105 = scmp.eq.s32.totalorder %s20, 1
      %p106 = por %p104, %p105
      %p108 = scmp.ne.s32.totalorder %s93, %s107
      %p109 = scmp.eq.s32.totalorder %s20, 0
      %p110 = por %p108, %p109
      %s112 = sadd.s32 %s111, 1
      %p115 = scmp.eq.s32.totalorder %s14, 1
      %p116 = scmp.ne.s32.totalorder %s111, %s113
      %p117 = scmp.eq.s32.totalorder %s14, 0
      %p118 = por %p116, %p117
      %p119 = scmp.ne.s32.totalorder %s111, %s113
      %p120 = scmp.eq.s32.totalorder %s19, 1
      %p121 = por %p119, %p120
      %p122 = scmp.ne.s32.totalorder %s113, %s114
      %p123 = scmp.eq.s32.totalorder %s19, 0
      %p124 = por %p122, %p123
      %p125 = scmp.ne.s32.totalorder %s113, %s114
      %p126 = scmp.eq.s32.totalorder %s20, 1
      %p127 = por %p125, %p126
      %p129 = scmp.ne.s32.totalorder %s114, %s128
      %p130 = scmp.eq.s32.totalorder %s20, 0
      %p131 = por %p129, %p130
      %s133 = sadd.s32 %s132, 1
      %p136 = scmp.eq.s32.totalorder %s14, 1
      %p137 = scmp.ne.s32.totalorder %s132, %s134
      %p138 = scmp.eq.s32.totalorder %s14, 0
      %p139 = por %p137, %p138
      %p140 = scmp.ne.s32.totalorder %s132, %s134
      %p141 = scmp.eq.s32.totalorder %s19, 1
      %p142 = por %p140, %p141
      %p143 = scmp.ne.s32.totalorder %s134, %s135
      %p144 = scmp.eq.s32.totalorder %s19, 0
      %p145 = por %p143, %p144
      %p146 = scmp.ne.s32.totalorder %s134, %s135
      %p147 = scmp.eq.s32.totalorder %s20, 1
      %p148 = por %p146, %p147
      %p150 = scmp.ne.s32.totalorder %s135, %s149
      %p151 = scmp.eq.s32.totalorder %s20, 0
      %p152 = por %p150, %p151
      %s154 = sadd.s32 %s153, 1
      %p157 = scmp.eq.s32.totalorder %s14, 1
      %p158 = scmp.ne.s32.totalorder %s153, %s155
      %p159 = scmp.eq.s32.totalorder %s14, 0
      %p160 = por %p158, %p159
      %p161 = scmp.ne.s32.totalorder %s153, %s155
      %p162 = scmp.eq.s32.totalorder %s19, 1
      %p163 = por %p161, %p162
      %p164 = scmp.ne.s32.totalorder %s155, %s156
      %p165 = scmp.eq.s32.totalorder %s19, 0
      %p166 = por %p164, %p165
      %p167 = scmp.ne.s32.totalorder %s155, %s156
      %p168 = scmp.eq.s32.totalorder %s20, 1
      %p169 = por %p167, %p168
      %p171 = scmp.ne.s32.totalorder %s156, %s170
      %p172 = scmp.eq.s32.totalorder %s20, 0
      %p173 = por %p171, %p172
      %s174 = ssub.s32 %s14, %s21
      %p175 = scmp.eq.s32.totalorder %s174, 0
      %s177 = sadd.s32 %s176, 1
      %s178 = scalar_select %p175, %s176, %s177
      %p181 = pneg %p175
      %p182 = scmp.eq.s32.totalorder %s14, 1
      %p183 = por %p181, %p182
      %p184 = scmp.ne.s32.totalorder %s176, %s179
      %p185 = scmp.eq.s32.totalorder %s14, 0
      %p186 = por %p184, %p185
      %p187 = scmp.ne.s32.totalorder %s176, %s179
      %p188 = scmp.eq.s32.totalorder %s19, 1
      %p189 = por %p187, %p188
      %p190 = scmp.ne.s32.totalorder %s179, %s180
      %p191 = scmp.eq.s32.totalorder %s19, 0
      %p192 = por %p190, %p191
      %p193 = scmp.ne.s32.totalorder %s179, %s180
      %p194 = scmp.eq.s32.totalorder %s20, 1
      %p195 = por %p193, %p194
      %p197 = scmp.ne.s32.totalorder %s180, %s196
      %p198 = scmp.eq.s32.totalorder %s20, 0
      %p199 = por %p197, %p198
      %p200 = scmp.le.s32.totalorder 1, %s14
      %p201 = scmp.lt.s32.totalorder %s14, 3
      %p202 = pnand %p200, %p201
      %p203 = pneg %p202
      // Predicated region
      $region9: #{tpu_custom_call.1} parent=5 // pred_check
        _
      $region10: #{tpu_custom_call.1} parent=5 // pred_check_branch
        %205 = sbr.rel (%p202) target = $region12
      $region11: #{tpu_custom_call.1} parent=5 // pred_region
        %s206 = ssub.s32 %s14, 1
        // Predicated region
        $region13: #{tpu_custom_call.1} parent=11 // pred_check
          %p207 = pneg %p61
        $region14: #{tpu_custom_call.1} parent=11 // pred_check_branch
          %209 = sbr.rel (%p207) target = $region16
        $region15: #{tpu_custom_call.1} parent=11 // pred_region
          _
        $region16: #{tpu_custom_call.1} parent=11 // pred_fallthru
          _
        // Predicated region
        $region17: #{tpu_custom_call.1} parent=11 // pred_check
          %p210 = pneg %p82
        $region18: #{tpu_custom_call.1} parent=11 // pred_check_branch
          %212 = sbr.rel (%p210) target = $region20
        $region19: #{tpu_custom_call.1} parent=11 // pred_region
          _
        $region20: #{tpu_custom_call.1} parent=11 // pred_fallthru
          _
        // Predicated region
        $region21: #{tpu_custom_call.1} parent=11 // pred_check
          %p213 = pneg %p103
        $region22: #{tpu_custom_call.1} parent=11 // pred_check_branch
          %215 = sbr.rel (%p213) target = $region24
        $region23: #{tpu_custom_call.1} parent=11 // pred_region
          %s217 = ssub.s32 4096, 4096
          %218 = vsyncadd [#allocation3], %s217
          %s219 = sshll.u32 [#allocation2], 4
          %s220 = int_to_ptr.vmem [resolvable:$true] %s219
          %225 = dma.hbm_to_vmem [thread:$0]  %s3, 4096, %s220, [#allocation3], 128, 128, 8
        $region24: #{tpu_custom_call.1} parent=11 // pred_fallthru
          _
        // Predicated region
        $region25: #{tpu_custom_call.1} parent=11 // pred_check
          %p226 = pneg %p124
        $region26: #{tpu_custom_call.1} parent=11 // pred_check_branch
          %228 = sbr.rel (%p226) target = $region28
        $region27: #{tpu_custom_call.1} parent=11 // pred_region
          _
        $region28: #{tpu_custom_call.1} parent=11 // pred_fallthru
          _
        // Predicated region
        $region29: #{tpu_custom_call.1} parent=11 // pred_check
          %p229 = pneg %p145
        $region30: #{tpu_custom_call.1} parent=11 // pred_check_branch
          %231 = sbr.rel (%p229) target = $region32
        $region31: #{tpu_custom_call.1} parent=11 // pred_region
          _
        $region32: #{tpu_custom_call.1} parent=11 // pred_fallthru
          _
        // Predicated region
        $region33: #{tpu_custom_call.1} parent=11 // pred_check
          %p232 = pneg %p166
        $region34: #{tpu_custom_call.1} parent=11 // pred_check_branch
          %234 = sbr.rel (%p232) target = $region36
        $region35: #{tpu_custom_call.1} parent=11 // pred_region
          _
        $region36: #{tpu_custom_call.1} parent=11 // pred_fallthru
          _
      $region12: #{tpu_custom_call.1} parent=5 // pred_fallthru
        _
      %p235 = scmp.lt.s32.totalorder %s14, 2
      // Predicated region
      $region37: #{tpu_custom_call.1} parent=5 // pred_check
        %p236 = pneg %p235
      $region38: #{tpu_custom_call.1} parent=5 // pred_check_branch
        %238 = sbr.rel (%p236) target = $region40
      $region39: #{tpu_custom_call.1} parent=5 // pred_region
        // Predicated region
        $region41: #{tpu_custom_call.1} parent=39 // pred_check
          %p239 = pneg %p34
        $region42: #{tpu_custom_call.1} parent=39 // pred_check_branch
          %241 = sbr.rel (%p239) target = $region44
        $region43: #{tpu_custom_call.1} parent=39 // pred_region
          %p242 = scmp.lt.s32.totalorder %s14, 1
          %s243 = scalar_select %p242, %s14, 1
          %s244 = smul.addr %s243, 8
          %s245 = scalar_lea.vmem %s0, %s244
        $region44: #{tpu_custom_call.1} parent=39 // pred_fallthru
          _
      $region40: #{tpu_custom_call.1} parent=5 // pred_fallthru
        _
      %p246 = scmp.le.s32.totalorder 1, %s14
      %p247 = scmp.lt.s32.totalorder %s14, 3
      %p248 = pnand %p246, %p247
      %p249 = pneg %p248
      // Predicated region
      $region45: #{tpu_custom_call.1} parent=5 // pred_check
        _
      $region46: #{tpu_custom_call.1} parent=5 // pred_check_branch
        %251 = sbr.rel (%p248) target = $region48
      $region47: #{tpu_custom_call.1} parent=5 // pred_region
        %s252 = ssub.s32 %s14, 1
        // Predicated region
        $region49: #{tpu_custom_call.1} parent=47 // pred_check
          %p253 = pneg %p103
        $region50: #{tpu_custom_call.1} parent=47 // pred_check_branch
          %255 = sbr.rel (%p253) target = $region52
        $region51: #{tpu_custom_call.1} parent=47 // pred_region
          %256 = dma.done [#allocation3], 4096
        $region52: #{tpu_custom_call.1} parent=47 // pred_fallthru
          _
        %p257 = scmp.lt.s32.totalorder %s19, 1
        %s258 = scalar_select %p257, %s19, 1
        %s259 = smul.addr %s258, 8
        %s260 = scalar_lea.vmem %s0, %s259
        %p261 = pneg %p40
        %p262 = pneg %p37
        %p263 = pneg %p61
        %p264 = pneg %p58
        %p265 = pneg %p82
        %p266 = pneg %p79
        %p267 = pneg %p103
        %p268 = pneg %p100
        %p269 = pneg %p124
        %p270 = pneg %p121
        %p271 = pneg %p145
        %p272 = pneg %p142
        %p273 = pneg %p166
        %p274 = pneg %p163
        %p275 = pneg %p192
        %p276 = pneg %p189
        %p277 = scmp.lt.s32.totalorder %s19, 1
        %s278 = scalar_select %p277, %s19, 1
        %s279 = smul.addr %s278, 8
        %s280 = scalar_lea.vmem %s7, %s279
        %p281 = scmp.lt.s32.totalorder %s19, 1
        %s282 = scalar_select %p281, %s19, 1
        %s283 = smul.addr %s282, 8
        %s284 = scalar_lea.vmem %s0, %s283
        %p285 = scmp.lt.s32.totalorder %s19, 1
        %s286 = scalar_select %p285, %s19, 1
        %s287 = smul.addr %s286, 8
        %s288 = scalar_lea.vmem %s7, %s287
        %v289 = vld [vmem:[%s284] sm:$0xff]
        %v290 = vld [vmem:[%s1] sm:$0xf]
        %v291 = vld [vmem:[%s2] sm:$0x1]
        %v293 = vlaneseq
        %v294 = vshrl.u32 %v293, 7
        %v295 = vsub.s32 0, %v294
        %v296 = vrot.slane %v291, %v295
        %vm298 = vcmask 31744
        %v300 = vsel %vm298, %v289, 0
        %vm302 = vcmask 1043456
        %v304 = vsel %vm302, %v290, 0
        %306 = vmatprep.subr.mxu0 0.0
        %307 = vmatpush1.msra.mxu0 0.0
        %308 = vmatprep.subr.mxu0 0.0
        %309 = vmatpush1.msra.mxu0 0.0
        %310 = vmatprep.subr.mxu0 0.0
        %311 = vmatpush1.msra.mxu0 0.0
        %312 = vmatprep.subr.mxu0 0.0
        %313 = vmatpush1.msra.mxu0 0.0
        %314 = vmatprep.subr.mxu0 0.0
        %315 = vmatpush1.msra.mxu0 0.0
        %316 = vmatprep.subr.mxu0 0.0
        %317 = vmatpush1.msra.mxu0 0.0
        %318 = vmatprep.subr.mxu0 0.0
        %319 = vmatpush1.msra.mxu0 0.0
        %320 = vmatprep.subr.mxu0 0.0
        %321 = vmatpush1.msra.mxu0 0.0
        %322 = vmatprep.subr.mxu0 0.0
        %323 = vmatpush1.msra.mxu0 0.0
        %324 = vmatprep.subr.mxu0 0.0
        %325 = vmatpush1.msra.mxu0 0.0
        %326 = vmatprep.subr.mxu0 0.0
        %327 = vmatpush1.msra.mxu0 0.0
        %328 = vmatprep.subr.mxu0 0.0
        %329 = vmatpush1.msra.mxu0 0.0
        %330 = vmatprep.subr.mxu0 0.0
        %331 = vmatpush1.msra.mxu0 0.0
        %332 = vmatprep.subr.mxu0 0.0
        %333 = vmatpush1.msra.mxu0 0.0
        %334 = vmatprep.subr.mxu0 0.0
        %335 = vmatpush1.msra.mxu0 0.0
        %336 = vmatprep.subr.mxu0 0.0
        %337 = vmatpush1.msra.mxu0 %v304
        %338 = vmatprep.subr.mxu0 0.0
        %339 = vmatpush2.msra.mxu0 0.0
        %340 = vmatprep.subr.mxu0 0.0
        %341 = vmatpush2.msra.mxu0 0.0
        %342 = vmatprep.subr.mxu0 0.0
        %343 = vmatpush2.msra.mxu0 0.0
        %344 = vmatprep.subr.mxu0 0.0
        %345 = vmatpush2.msra.mxu0 0.0
        %346 = vmatprep.subr.mxu0 0.0
        %347 = vmatpush2.msra.mxu0 0.0
        %348 = vmatprep.subr.mxu0 0.0
        %349 = vmatpush2.msra.mxu0 0.0
        %350 = vmatprep.subr.mxu0 0.0
        %351 = vmatpush2.msra.mxu0 0.0
        %352 = vmatprep.subr.mxu0 0.0
        %353 = vmatpush2.msra.mxu0 0.0
        %354 = vmatprep.subr.mxu0 0.0
        %355 = vmatpush2.msra.mxu0 0.0
        %356 = vmatprep.subr.mxu0 0.0
        %357 = vmatpush2.msra.mxu0 0.0
        %358 = vmatprep.subr.mxu0 0.0
        %359 = vmatpush2.msra.mxu0 0.0
        %360 = vmatprep.subr.mxu0 0.0
        %361 = vmatpush2.msra.mxu0 0.0
        %362 = vmatprep.subr.mxu0 0.0
        %363 = vmatpush2.msra.mxu0 0.0
        %364 = vmatprep.subr.mxu0 0.0
        %365 = vmatpush2.msra.mxu0 0.0
        %366 = vmatprep.subr.mxu0 0.0
        %367 = vmatpush2.msra.mxu0 0.0
        %368 = vmatprep.subr.mxu0 0.0
        %369 = vmatpush2.msra.mxu0 0.0
        %370 = vmatprep.mubr.f32.mxu0 0.0
        %371 = vmatmul.mubr.f32.gmra.mxu0 %v300
        %v372 = vpop.f32.mrf.mxu0
        %v373 = vadd.f32 %v296, %v372
        %v374 = vpop.f32.mrf.mxu0
        %375 = vdwg.mxu0
        %vm376 = vcmp.gt.f32.partialorder %v373, 0.0
        %v377 = vmul.f32 %v373, 1.442695
        %v378 = vpow.pop %v377
        %v379 = vsub.f32 %v378, 1.0
        %v380 = vsel %vm376, %v373, %v379
        %v381 = vld [vmem:[#allocation2] sm:$0xff]
        %v382 = vld [vmem:[#allocation2 + $0x8] sm:$0xff]
        %v383 = vld [vmem:[#allocation2 + $0x10] sm:$0xff]
        %v384 = vld [vmem:[#allocation2 + $0x18] sm:$0xff]
        %v385 = vld [vmem:[#allocation2 + $0x20] sm:$0xff]
        %v386 = vld [vmem:[#allocation2 + $0x28] sm:$0xff]
        %v387 = vld [vmem:[#allocation2 + $0x30] sm:$0xff]
        %v388 = vld [vmem:[#allocation2 + $0x38] sm:$0xff]
        %v389 = vld [vmem:[#allocation2 + $0x40] sm:$0xff]
        %v390 = vld [vmem:[#allocation2 + $0x48] sm:$0xff]
        %v391 = vld [vmem:[#allocation2 + $0x50] sm:$0xff]
        %v392 = vld [vmem:[#allocation2 + $0x58] sm:$0xff]
        %v393 = vld [vmem:[#allocation2 + $0x60] sm:$0xff]
        %v394 = vld [vmem:[#allocation2 + $0x68] sm:$0xff]
        %v395 = vld [vmem:[#allocation2 + $0x70] sm:$0xff]
        %v396 = vld [vmem:[#allocation2 + $0x78] sm:$0xff]
        %v397 = vld [vmem:[%s4] sm:$0x1]
        %v399 = vlaneseq
        %v400 = vshrl.u32 %v399, 7
        %v401 = vsub.s32 0, %v400
        %v402 = vrot.slane %v397, %v401
        %404 = vmatprep.subr.mxu0 0.0
        %405 = vmatpush1.msra.mxu0 %v396
        %406 = vmatprep.subr.mxu0 0.0
        %407 = vmatpush1.msra.mxu0 %v395
        %408 = vmatprep.subr.mxu0 0.0
        %409 = vmatpush1.msra.mxu0 %v394
        %410 = vmatprep.subr.mxu0 0.0
        %411 = vmatpush1.msra.mxu0 %v393
        %412 = vmatprep.subr.mxu0 0.0
        %413 = vmatpush1.msra.mxu0 %v392
        %414 = vmatprep.subr.mxu0 0.0
        %415 = vmatpush1.msra.mxu0 %v391
        %416 = vmatprep.subr.mxu0 0.0
        %417 = vmatpush1.msra.mxu0 %v390
        %418 = vmatprep.subr.mxu0 0.0
        %419 = vmatpush1.msra.mxu0 %v389
        %420 = vmatprep.subr.mxu0 0.0
        %421 = vmatpush1.msra.mxu0 %v388
        %422 = vmatprep.subr.mxu0 0.0
        %423 = vmatpush1.msra.mxu0 %v387
        %424 = vmatprep.subr.mxu0 0.0
        %425 = vmatpush1.msra.mxu0 %v386
        %426 = vmatprep.subr.mxu0 0.0
        %427 = vmatpush1.msra.mxu0 %v385
        %428 = vmatprep.subr.mxu0 0.0
        %429 = vmatpush1.msra.mxu0 %v384
        %430 = vmatprep.subr.mxu0 0.0
        %431 = vmatpush1.msra.mxu0 %v383
        %432 = vmatprep.subr.mxu0 0.0
        %433 = vmatpush1.msra.mxu0 %v382
        %434 = vmatprep.subr.mxu0 0.0
        %435 = vmatpush1.msra.mxu0 %v381
        %436 = vmatprep.subr.mxu0 0.0
        %437 = vmatpush2.msra.mxu0 0.0
        %438 = vmatprep.subr.mxu0 0.0
        %439 = vmatpush2.msra.mxu0 0.0
        %440 = vmatprep.subr.mxu0 0.0
        %441 = vmatpush2.msra.mxu0 0.0
        %442 = vmatprep.subr.mxu0 0.0
        %443 = vmatpush2.msra.mxu0 0.0
        %444 = vmatprep.subr.mxu0 0.0
        %445 = vmatpush2.msra.mxu0 0.0
        %446 = vmatprep.subr.mxu0 0.0
        %447 = vmatpush2.msra.mxu0 0.0
        %448 = vmatprep.subr.mxu0 0.0
        %449 = vmatpush2.msra.mxu0 0.0
        %450 = vmatprep.subr.mxu0 0.0
        %451 = vmatpush2.msra.mxu0 0.0
        %452 = vmatprep.subr.mxu0 0.0
        %453 = vmatpush2.msra.mxu0 0.0
        %454 = vmatprep.subr.mxu0 0.0
        %455 = vmatpush2.msra.mxu0 0.0
        %456 = vmatprep.subr.mxu0 0.0
        %457 = vmatpush2.msra.mxu0 0.0
        %458 = vmatprep.subr.mxu0 0.0
        %459 = vmatpush2.msra.mxu0 0.0
        %460 = vmatprep.subr.mxu0 0.0
        %461 = vmatpush2.msra.mxu0 0.0
        %462 = vmatprep.subr.mxu0 0.0
        %463 = vmatpush2.msra.mxu0 0.0
        %464 = vmatprep.subr.mxu0 0.0
        %465 = vmatpush2.msra.mxu0 0.0
        %466 = vmatprep.subr.mxu0 0.0
        %467 = vmatpush2.msra.mxu0 0.0
        %468 = vmatprep.mubr.f32.mxu0 0.0
        %469 = vmatmul.mubr.f32.gmra.mxu0 %v380
        %v470 = vpop.f32.mrf.mxu0
        %v471 = vadd.f32 %v402, %v470
        %v472 = vpop.f32.mrf.mxu0
        %473 = vdwg.mxu0
        %vm474 = vcmp.gt.f32.partialorder %v471, 0.0
        %v475 = vmul.f32 %v471, 1.442695
        %v476 = vpow.pop %v475
        %v477 = vsub.f32 %v476, 1.0
        %v478 = vsel %vm474, %v471, %v477
        %v479 = vadd.f32 %v380, %v478
        %s480 = scalar_lea.vmem [#allocation2], 128
        %v481 = vld [vmem:[%s480] sm:$0xff]
        %v482 = vld [vmem:[%s480 + $0x8] sm:$0xff]
        %v483 = vld [vmem:[%s480 + $0x10] sm:$0xff]
        %v484 = vld [vmem:[%s480 + $0x18] sm:$0xff]
        %v485 = vld [vmem:[%s480 + $0x20] sm:$0xff]
        %v486 = vld [vmem:[%s480 + $0x28] sm:$0xff]
        %v487 = vld [vmem:[%s480 + $0x30] sm:$0xff]
        %v488 = vld [vmem:[%s480 + $0x38] sm:$0xff]
        %v489 = vld [vmem:[%s480 + $0x40] sm:$0xff]
        %v490 = vld [vmem:[%s480 + $0x48] sm:$0xff]
        %v491 = vld [vmem:[%s480 + $0x50] sm:$0xff]
        %v492 = vld [vmem:[%s480 + $0x58] sm:$0xff]
        %v493 = vld [vmem:[%s480 + $0x60] sm:$0xff]
        %v494 = vld [vmem:[%s480 + $0x68] sm:$0xff]
        %v495 = vld [vmem:[%s480 + $0x70] sm:$0xff]
        %v496 = vld [vmem:[%s480 + $0x78] sm:$0xff]
        %s497 = scalar_lea.vmem %s4, 1
        %v498 = vld [vmem:[%s497] sm:$0x1]
        %v500 = vlaneseq
        %v501 = vshrl.u32 %v500, 7
        %v502 = vsub.s32 0, %v501
        %v503 = vrot.slane %v498, %v502
        %505 = vmatprep.subr.mxu0 0.0
        %506 = vmatpush1.msra.mxu0 %v496
        %507 = vmatprep.subr.mxu0 0.0
        %508 = vmatpush1.msra.mxu0 %v495
        %509 = vmatprep.subr.mxu0 0.0
        %510 = vmatpush1.msra.mxu0 %v494
        %511 = vmatprep.subr.mxu0 0.0
        %512 = vmatpush1.msra.mxu0 %v493
        %513 = vmatprep.subr.mxu0 0.0
        %514 = vmatpush1.msra.mxu0 %v492
        %515 = vmatprep.subr.mxu0 0.0
        %516 = vmatpush1.msra.mxu0 %v491
        %517 = vmatprep.subr.mxu0 0.0
        %518 = vmatpush1.msra.mxu0 %v490
        %519 = vmatprep.subr.mxu0 0.0
        %520 = vmatpush1.msra.mxu0 %v489
        %521 = vmatprep.subr.mxu0 0.0
        %522 = vmatpush1.msra.mxu0 %v488
        %523 = vmatprep.subr.mxu0 0.0
        %524 = vmatpush1.msra.mxu0 %v487
        %525 = vmatprep.subr.mxu0 0.0
        %526 = vmatpush1.msra.mxu0 %v486
        %527 = vmatprep.subr.mxu0 0.0
        %528 = vmatpush1.msra.mxu0 %v485
        %529 = vmatprep.subr.mxu0 0.0
        %530 = vmatpush1.msra.mxu0 %v484
        %531 = vmatprep.subr.mxu0 0.0
        %532 = vmatpush1.msra.mxu0 %v483
        %533 = vmatprep.subr.mxu0 0.0
        %534 = vmatpush1.msra.mxu0 %v482
        %535 = vmatprep.subr.mxu0 0.0
        %536 = vmatpush1.msra.mxu0 %v481
        %537 = vmatprep.subr.mxu0 0.0
        %538 = vmatpush2.msra.mxu0 0.0
        %539 = vmatprep.subr.mxu0 0.0
        %540 = vmatpush2.msra.mxu0 0.0
        %541 = vmatprep.subr.mxu0 0.0
        %542 = vmatpush2.msra.mxu0 0.0
        %543 = vmatprep.subr.mxu0 0.0
        %544 = vmatpush2.msra.mxu0 0.0
        %545 = vmatprep.subr.mxu0 0.0
        %546 = vmatpush2.msra.mxu0 0.0
        %547 = vmatprep.subr.mxu0 0.0
        %548 = vmatpush2.msra.mxu0 0.0
        %549 = vmatprep.subr.mxu0 0.0
        %550 = vmatpush2.msra.mxu0 0.0
        %551 = vmatprep.subr.mxu0 0.0
        %552 = vmatpush2.msra.mxu0 0.0
        %553 = vmatprep.subr.mxu0 0.0
        %554 = vmatpush2.msra.mxu0 0.0
        %555 = vmatprep.subr.mxu0 0.0
        %556 = vmatpush2.msra.mxu0 0.0
        %557 = vmatprep.subr.mxu0 0.0
        %558 = vmatpush2.msra.mxu0 0.0
        %559 = vmatprep.subr.mxu0 0.0
        %560 = vmatpush2.msra.mxu0 0.0
        %561 = vmatprep.subr.mxu0 0.0
        %562 = vmatpush2.msra.mxu0 0.0
        %563 = vmatprep.subr.mxu0 0.0
        %564 = vmatpush2.msra.mxu0 0.0
        %565 = vmatprep.subr.mxu0 0.0
        %566 = vmatpush2.msra.mxu0 0.0
        %567 = vmatprep.subr.mxu0 0.0
        %568 = vmatpush2.msra.mxu0 0.0
        %569 = vmatprep.mubr.f32.mxu0 0.0
        %570 = vmatmul.mubr.f32.gmra.mxu0 %v479
        %v571 = vpop.f32.mrf.mxu0
        %v572 = vadd.f32 %v503, %v571
        %v573 = vpop.f32.mrf.mxu0
        %574 = vdwg.mxu0
        %vm575 = vcmp.gt.f32.partialorder %v572, 0.0
        %v576 = vmul.f32 %v572, 1.442695
        %v577 = vpow.pop %v576
        %v578 = vsub.f32 %v577, 1.0
        %v579 = vsel %vm575, %v572, %v578
        %v580 = vadd.f32 %v479, %v579
        %v581 = vld [vmem:[%s5] sm:$0xff]
        %v582 = vld [vmem:[%s5 + $0x8] sm:$0xff]
        %v583 = vld [vmem:[%s5 + $0x10] sm:$0xff]
        %v584 = vld [vmem:[%s5 + $0x18] sm:$0xff]
        %v585 = vld [vmem:[%s5 + $0x20] sm:$0xff]
        %v586 = vld [vmem:[%s5 + $0x28] sm:$0xff]
        %v587 = vld [vmem:[%s5 + $0x30] sm:$0xff]
        %v588 = vld [vmem:[%s5 + $0x38] sm:$0xff]
        %v589 = vld [vmem:[%s5 + $0x40] sm:$0xff]
        %v590 = vld [vmem:[%s5 + $0x48] sm:$0xff]
        %v591 = vld [vmem:[%s5 + $0x50] sm:$0xff]
        %v592 = vld [vmem:[%s5 + $0x58] sm:$0xff]
        %v593 = vld [vmem:[%s5 + $0x60] sm:$0xff]
        %v594 = vld [vmem:[%s5 + $0x68] sm:$0xff]
        %v595 = vld [vmem:[%s5 + $0x70] sm:$0xff]
        %v596 = vld [vmem:[%s5 + $0x78] sm:$0xff]
        %v597 = vld [vmem:[%s6] sm:$0x1]
        %v599 = vlaneseq
        %v600 = vshrl.u32 %v599, 7
        %v601 = vsub.s32 0, %v600
        %v602 = vrot.slane %v597, %v601
        %604 = vmatprep.subr.mxu0 0.0
        %605 = vmatpush1.msra.mxu0 %v596
        %606 = vmatprep.subr.mxu0 0.0
        %607 = vmatpush1.msra.mxu0 %v595
        %608 = vmatprep.subr.mxu0 0.0
        %609 = vmatpush1.msra.mxu0 %v594
        %610 = vmatprep.subr.mxu0 0.0
        %611 = vmatpush1.msra.mxu0 %v593
        %612 = vmatprep.subr.mxu0 0.0
        %613 = vmatpush1.msra.mxu0 %v592
        %614 = vmatprep.subr.mxu0 0.0
        %615 = vmatpush1.msra.mxu0 %v591
        %616 = vmatprep.subr.mxu0 0.0
        %617 = vmatpush1.msra.mxu0 %v590
        %618 = vmatprep.subr.mxu0 0.0
        %619 = vmatpush1.msra.mxu0 %v589
        %620 = vmatprep.subr.mxu0 0.0
        %621 = vmatpush1.msra.mxu0 %v588
        %622 = vmatprep.subr.mxu0 0.0
        %623 = vmatpush1.msra.mxu0 %v587
        %624 = vmatprep.subr.mxu0 0.0
        %625 = vmatpush1.msra.mxu0 %v586
        %626 = vmatprep.subr.mxu0 0.0
        %627 = vmatpush1.msra.mxu0 %v585
        %628 = vmatprep.subr.mxu0 0.0
        %629 = vmatpush1.msra.mxu0 %v584
        %630 = vmatprep.subr.mxu0 0.0
        %631 = vmatpush1.msra.mxu0 %v583
        %632 = vmatprep.subr.mxu0 0.0
        %633 = vmatpush1.msra.mxu0 %v582
        %634 = vmatprep.subr.mxu0 0.0
        %635 = vmatpush1.msra.mxu0 %v581
        %636 = vmatprep.subr.mxu0 0.0
        %637 = vmatpush2.msra.mxu0 0.0
        %638 = vmatprep.subr.mxu0 0.0
        %639 = vmatpush2.msra.mxu0 0.0
        %640 = vmatprep.subr.mxu0 0.0
        %641 = vmatpush2.msra.mxu0 0.0
        %642 = vmatprep.subr.mxu0 0.0
        %643 = vmatpush2.msra.mxu0 0.0
        %644 = vmatprep.subr.mxu0 0.0
        %645 = vmatpush2.msra.mxu0 0.0
        %646 = vmatprep.subr.mxu0 0.0
        %647 = vmatpush2.msra.mxu0 0.0
        %648 = vmatprep.subr.mxu0 0.0
        %649 = vmatpush2.msra.mxu0 0.0
        %650 = vmatprep.subr.mxu0 0.0
        %651 = vmatpush2.msra.mxu0 0.0
        %652 = vmatprep.subr.mxu0 0.0
        %653 = vmatpush2.msra.mxu0 0.0
        %654 = vmatprep.subr.mxu0 0.0
        %655 = vmatpush2.msra.mxu0 0.0
        %656 = vmatprep.subr.mxu0 0.0
        %657 = vmatpush2.msra.mxu0 0.0
        %658 = vmatprep.subr.mxu0 0.0
        %659 = vmatpush2.msra.mxu0 0.0
        %660 = vmatprep.subr.mxu0 0.0
        %661 = vmatpush2.msra.mxu0 0.0
        %662 = vmatprep.subr.mxu0 0.0
        %663 = vmatpush2.msra.mxu0 0.0
        %664 = vmatprep.subr.mxu0 0.0
        %665 = vmatpush2.msra.mxu0 0.0
        %666 = vmatprep.subr.mxu0 0.0
        %667 = vmatpush2.msra.mxu0 0.0
        %668 = vmatprep.mubr.f32.mxu0 0.0
        %669 = vmatmul.mubr.f32.gmra.mxu0 %v580
        %v670 = vpop.f32.mrf.mxu0
        %v671 = vadd.f32 %v602, %v670
        %v672 = vpop.f32.mrf.mxu0
        %673 = vdwg.mxu0
        %vm674 = vcmask 64512
        %675 = vst.msk [vmem:[%s288] sm:$0xff] %vm674, %v671
        %p676 = scmp.lt.s32.totalorder %s19, 1
        %s677 = scalar_select %p676, %s19, 1
        %s678 = smul.addr %s677, 8
        %s679 = scalar_lea.vmem %s7, %s678
        // Predicated region
        $region53: #{tpu_custom_call.1} parent=47 // pred_check
          %p680 = pneg %p189
        $region54: #{tpu_custom_call.1} parent=47 // pred_check_branch
          %682 = sbr.rel (%p680) target = $region56
        $region55: #{tpu_custom_call.1} parent=47 // pred_region
          _
        $region56: #{tpu_custom_call.1} parent=47 // pred_fallthru
          _
      $region48: #{tpu_custom_call.1} parent=5 // pred_fallthru
        _
      %p683 = scmp.le.s32.totalorder 2, %s14
      // Predicated region
      $region57: #{tpu_custom_call.1} parent=5 // pred_check
        %p684 = pneg %p683
      $region58: #{tpu_custom_call.1} parent=5 // pred_check_branch
        %686 = sbr.rel (%p684) target = $region60
      $region59: #{tpu_custom_call.1} parent=5 // pred_region
        %s687 = ssub.s32 %s14, 2
        // Predicated region
        $region61: #{tpu_custom_call.1} parent=59 // pred_check
          %p688 = pneg %p195
        $region62: #{tpu_custom_call.1} parent=59 // pred_check_branch
          %690 = sbr.rel (%p688) target = $region64
        $region63: #{tpu_custom_call.1} parent=59 // pred_region
          %p691 = scmp.lt.s32.totalorder %s20, 1
          %s692 = scalar_select %p691, %s20, 1
          %s693 = smul.addr %s692, 8
          %s694 = scalar_lea.vmem %s7, %s693
        $region64: #{tpu_custom_call.1} parent=59 // pred_fallthru
          _
      $region60: #{tpu_custom_call.1} parent=5 // pred_fallthru
        _
    $region6: #{tpu_custom_call.1} parent=1 // loop_footer
      %s18 = sadd.s32 1, %s14
    $region7: #{tpu_custom_call.1} parent=1 // loop_footer_branch
      %13 = sbr.rel target = $region3
    $region8: #{tpu_custom_call.1} parent=1 // loop_exit
      _
    %695 = vsyncpa [#allocation3], 1
    %s696 = scalar_lea.sflag [#allocation3], 1
    %697 = vsyncpa %s696, 1

// kernel: tpu_custom_call.1
$region0: #{tpu_custom_call.1}
  #allocation0 [shape = 'u32[]', space=smem, size = 0x4, offset = 0x4, fixed_abs, tag = 'smem constant byte address 0x4 - core index']
  #allocation1 [shape = 'u32[144,128]{1,0:T(1,128)}', space=vmem, size = 0x12000, scoped, tag = 'internal scratch']
  %s0 = inlined_call_operand.vmem [shape: f32[16,4], index: 0, kind: input, shape index: {}]
  %s1 = inlined_call_operand.vmem [shape: f32[4,128], index: 1, kind: input, shape index: {}]
  %s2 = inlined_call_operand.vmem [shape: f32[1,128], index: 2, kind: input, shape index: {}]
  %s3 = inlined_call_operand.hbm [shape: f32[2,128,128], index: 3, kind: input, shape index: {}]
  %s4 = inlined_call_operand.vmem [shape: f32[2,1,128], index: 4, kind: input, shape index: {}]
  %s5 = inlined_call_operand.vmem [shape: f32[128,8], index: 5, kind: input, shape index: {}]
  %s6 = inlined_call_operand.vmem [shape: f32[1,8], index: 6, kind: input, shape index: {}]
  %s7 = inlined_call_operand.vmem [shape: f32[16,8], index: 7, kind: output, shape index: {}]
  %s8 = sld [smem:[#allocation0]]
  $region65: #{tpu_custom_call.1} parent=0
    _
  %s10 = ssub.s32 1, %s8
  %s11 = scalar_select 0, %s10, %s8
  $region1: #{tpu_custom_call.1} parent=0
    #allocation2 [shape = 'u8[131072]{0}', space=vmem, size = 0x20000, scoped, tag = 'input window, operand 3, single buffered']
    #allocation3 [shape = 's32[2]{0}', space=sflag, size = 0x8, scoped, tag = 'scoped memory for tpu_custom_call.1']
    %12 = vsyncpa [#allocation3], 0
    loop: start=0, step=1, limit=4
    $region2: #{tpu_custom_call.1} parent=1 // loop_pre_header
      _
    $region3: #{tpu_custom_call.1} parent=1 // loop_header
      %s14 = sphi 0, %s18
      %p15 = scmp.ge.s32.totalorder %s14, 4
      %s24 = sphi 0, %s26
      %s27 = sphi 0, %s24
      %s28 = sphi 0, %s27
      %s44 = sphi 0, %s28
      %s48 = sphi 0, %s48
      %s50 = sphi 0, %s48
      %s51 = sphi 0, %s50
      %s65 = sphi 0, %s51
      %s69 = sphi 0, %s69
      %s71 = sphi 0, %s69
      %s72 = sphi 0, %s71
      %s86 = sphi 0, %s72
      %s90 = sphi 0, %s90
      %s92 = sphi 0, %s90
      %s93 = sphi 0, %s92
      %s107 = sphi 0, %s93
      %s111 = sphi 0, %s111
      %s113 = sphi 0, %s111
      %s114 = sphi 0, %s113
      %s128 = sphi 0, %s114
      %s132 = sphi 0, %s132
      %s134 = sphi 0, %s132
      %s135 = sphi 0, %s134
      %s149 = sphi 0, %s135
      %s153 = sphi 0, %s153
      %s155 = sphi 0, %s153
      %s156 = sphi 0, %s155
      %s170 = sphi 0, %s156
      %s176 = sphi 0, %s178
      %s179 = sphi 0, %s176
      %s180 = sphi 0, %s179
      %s196 = sphi 0, %s180
    $region4: #{tpu_custom_call.1} parent=1 // loop_header_branch
      %17 = sbr.rel (%p15) target = $region8
    $region5: #{tpu_custom_call.1} parent=1 // loop_body
      %s19 = ssub.s32 %s14, 1
      %s20 = ssub.s32 %s14, 2
      %s21 = sadd.s32 %s14, 1
      %s22 = ssub.s32 %s14, %s21
      %p23 = scmp.eq.s32.totalorder %s22, 0
      %s25 = sadd.s32 %s24, 1
      %s26 = scalar_select %p23, %s24, %s25
      %p29 = pneg %p23
      %p30 = scmp.eq.s32.totalorder %s14, 1
      %p31 = por %p29, %p30
      %p32 = scmp.ne.s32.totalorder %s24, %s27
      %p33 = scmp.eq.s32.totalorder %s14, 0
      %p34 = por %p32, %p33
      %p35 = scmp.ne.s32.totalorder %s24, %s27
      %p36 = scmp.eq.s32.totalorder %s19, 1
      %p37 = por %p35, %p36
      %p38 = scmp.ne.s32.totalorder %s27, %s28
      %p39 = scmp.eq.s32.totalorder %s19, 0
      %p40 = por %p38, %p39
      %p41 = scmp.ne.s32.totalorder %s27, %s28
      %p42 = scmp.eq.s32.totalorder %s20, 1
      %p43 = por %p41, %p42
      %p45 = scmp.ne.s32.totalorder %s28, %s44
      %p46 = scmp.eq.s32.totalorder %s20, 0
      %p47 = por %p45, %p46
      %s49 = sadd.s32 %s48, 1
      %p52 = scmp.eq.s32.totalorder %s14, 1
      %p53 = scmp.ne.s32.totalorder %s48, %s50
      %p54 = scmp.eq.s32.totalorder %s14, 0
      %p55 = por %p53, %p54
      %p56 = scmp.ne.s32.totalorder %s48, %s50
      %p57 = scmp.eq.s32.totalorder %s19, 1
      %p58 = por %p56, %p57
      %p59 = scmp.ne.s32.totalorder %s50, %s51
      %p60 = scmp.eq.s32.totalorder %s19, 0
      %p61 = por %p59, %p60
      %p62 = scmp.ne.s32.totalorder %s50, %s51
      %p63 = scmp.eq.s32.totalorder %s20, 1
      %p64 = por %p62, %p63
      %p66 = scmp.ne.s32.totalorder %s51, %s65
      %p67 = scmp.eq.s32.totalorder %s20, 0
      %p68 = por %p66, %p67
      %s70 = sadd.s32 %s69, 1
      %p73 = scmp.eq.s32.totalorder %s14, 1
      %p74 = scmp.ne.s32.totalorder %s69, %s71
      %p75 = scmp.eq.s32.totalorder %s14, 0
      %p76 = por %p74, %p75
      %p77 = scmp.ne.s32.totalorder %s69, %s71
      %p78 = scmp.eq.s32.totalorder %s19, 1
      %p79 = por %p77, %p78
      %p80 = scmp.ne.s32.totalorder %s71, %s72
      %p81 = scmp.eq.s32.totalorder %s19, 0
      %p82 = por %p80, %p81
      %p83 = scmp.ne.s32.totalorder %s71, %s72
      %p84 = scmp.eq.s32.totalorder %s20, 1
      %p85 = por %p83, %p84
      %p87 = scmp.ne.s32.totalorder %s72, %s86
      %p88 = scmp.eq.s32.totalorder %s20, 0
      %p89 = por %p87, %p88
      %s91 = sadd.s32 %s90, 1
      %p94 = scmp.eq.s32.totalorder %s14, 1
      %p95 = scmp.ne.s32.totalorder %s90, %s92
      %p96 = scmp.eq.s32.totalorder %s14, 0
      %p97 = por %p95, %p96
      %p98 = scmp.ne.s32.totalorder %s90, %s92
      %p99 = scmp.eq.s32.totalorder %s19, 1
      %p100 = por %p98, %p99
      %p101 = scmp.ne.s32.totalorder %s92, %s93
      %p102 = scmp.eq.s32.totalorder %s19, 0
      %p103 = por %p101, %p102
      %p104 = scmp.ne.s32.totalorder %s92, %s93
      %p105 = scmp.eq.s32.totalorder %s20, 1
      %p106 = por %p104, %p105
      %p108 = scmp.ne.s32.totalorder %s93, %s107
      %p109 = scmp.eq.s32.totalorder %s20, 0
      %p110 = por %p108, %p109
      %s112 = sadd.s32 %s111, 1
      %p115 = scmp.eq.s32.totalorder %s14, 1
      %p116 = scmp.ne.s32.totalorder %s111, %s113
      %p117 = scmp.eq.s32.totalorder %s14, 0
      %p118 = por %p116, %p117
      %p119 = scmp.ne.s32.totalorder %s111, %s113
      %p120 = scmp.eq.s32.totalorder %s19, 1
      %p121 = por %p119, %p120
      %p122 = scmp.ne.s32.totalorder %s113, %s114
      %p123 = scmp.eq.s32.totalorder %s19, 0
      %p124 = por %p122, %p123
      %p125 = scmp.ne.s32.totalorder %s113, %s114
      %p126 = scmp.eq.s32.totalorder %s20, 1
      %p127 = por %p125, %p126
      %p129 = scmp.ne.s32.totalorder %s114, %s128
      %p130 = scmp.eq.s32.totalorder %s20, 0
      %p131 = por %p129, %p130
      %s133 = sadd.s32 %s132, 1
      %p136 = scmp.eq.s32.totalorder %s14, 1
      %p137 = scmp.ne.s32.totalorder %s132, %s134
      %p138 = scmp.eq.s32.totalorder %s14, 0
      %p139 = por %p137, %p138
      %p140 = scmp.ne.s32.totalorder %s132, %s134
      %p141 = scmp.eq.s32.totalorder %s19, 1
      %p142 = por %p140, %p141
      %p143 = scmp.ne.s32.totalorder %s134, %s135
      %p144 = scmp.eq.s32.totalorder %s19, 0
      %p145 = por %p143, %p144
      %p146 = scmp.ne.s32.totalorder %s134, %s135
      %p147 = scmp.eq.s32.totalorder %s20, 1
      %p148 = por %p146, %p147
      %p150 = scmp.ne.s32.totalorder %s135, %s149
      %p151 = scmp.eq.s32.totalorder %s20, 0
      %p152 = por %p150, %p151
      %s154 = sadd.s32 %s153, 1
      %p157 = scmp.eq.s32.totalorder %s14, 1
      %p158 = scmp.ne.s32.totalorder %s153, %s155
      %p159 = scmp.eq.s32.totalorder %s14, 0
      %p160 = por %p158, %p159
      %p161 = scmp.ne.s32.totalorder %s153, %s155
      %p162 = scmp.eq.s32.totalorder %s19, 1
      %p163 = por %p161, %p162
      %p164 = scmp.ne.s32.totalorder %s155, %s156
      %p165 = scmp.eq.s32.totalorder %s19, 0
      %p166 = por %p164, %p165
      %p167 = scmp.ne.s32.totalorder %s155, %s156
      %p168 = scmp.eq.s32.totalorder %s20, 1
      %p169 = por %p167, %p168
      %p171 = scmp.ne.s32.totalorder %s156, %s170
      %p172 = scmp.eq.s32.totalorder %s20, 0
      %p173 = por %p171, %p172
      %s174 = ssub.s32 %s14, %s21
      %p175 = scmp.eq.s32.totalorder %s174, 0
      %s177 = sadd.s32 %s176, 1
      %s178 = scalar_select %p175, %s176, %s177
      %p181 = pneg %p175
      %p182 = scmp.eq.s32.totalorder %s14, 1
      %p183 = por %p181, %p182
      %p184 = scmp.ne.s32.totalorder %s176, %s179
      %p185 = scmp.eq.s32.totalorder %s14, 0
      %p186 = por %p184, %p185
      %p187 = scmp.ne.s32.totalorder %s176, %s179
      %p188 = scmp.eq.s32.totalorder %s19, 1
      %p189 = por %p187, %p188
      %p190 = scmp.ne.s32.totalorder %s179, %s180
      %p191 = scmp.eq.s32.totalorder %s19, 0
      %p192 = por %p190, %p191
      %p193 = scmp.ne.s32.totalorder %s179, %s180
      %p194 = scmp.eq.s32.totalorder %s20, 1
      %p195 = por %p193, %p194
      %p197 = scmp.ne.s32.totalorder %s180, %s196
      %p198 = scmp.eq.s32.totalorder %s20, 0
      %p199 = por %p197, %p198
      %p200 = scmp.le.s32.totalorder 1, %s14
      %p201 = scmp.lt.s32.totalorder %s14, 3
      %p202 = pnand %p200, %p201
      %p203 = pneg %p202
      // Predicated region
      $region9: #{tpu_custom_call.1} parent=5 // pred_check
        _
      $region10: #{tpu_custom_call.1} parent=5 // pred_check_branch
        %205 = sbr.rel (%p202) target = $region12
      $region11: #{tpu_custom_call.1} parent=5 // pred_region
        %s206 = ssub.s32 %s14, 1
        // Predicated region
        $region13: #{tpu_custom_call.1} parent=11 // pred_check
          %p207 = pneg %p61
        $region14: #{tpu_custom_call.1} parent=11 // pred_check_branch
          %209 = sbr.rel (%p207) target = $region16
        $region15: #{tpu_custom_call.1} parent=11 // pred_region
          _
        $region16: #{tpu_custom_call.1} parent=11 // pred_fallthru
          _
        // Predicated region
        $region17: #{tpu_custom_call.1} parent=11 // pred_check
          %p210 = pneg %p82
        $region18: #{tpu_custom_call.1} parent=11 // pred_check_branch
          %212 = sbr.rel (%p210) target = $region20
        $region19: #{tpu_custom_call.1} parent=11 // pred_region
          _
        $region20: #{tpu_custom_call.1} parent=11 // pred_fallthru
          _
        // Predicated region
        $region21: #{tpu_custom_call.1} parent=11 // pred_check
          %p213 = pneg %p103
        $region22: #{tpu_custom_call.1} parent=11 // pred_check_branch
          %215 = sbr.rel (%p213) target = $region24
        $region23: #{tpu_custom_call.1} parent=11 // pred_region
          %s217 = ssub.s32 4096, 4096
          %218 = vsyncadd [#allocation3], %s217
          %s219 = sshll.u32 [#allocation2], 4
          %s220 = int_to_ptr.vmem [resolvable:$true] %s219
          %225 = dma.hbm_to_vmem [thread:$0]  %s3, 4096, %s220, [#allocation3], 128, 128, 8
        $region24: #{tpu_custom_call.1} parent=11 // pred_fallthru
          _
        // Predicated region
        $region25: #{tpu_custom_call.1} parent=11 // pred_check
          %p226 = pneg %p124
        $region26: #{tpu_custom_call.1} parent=11 // pred_check_branch
          %228 = sbr.rel (%p226) target = $region28
        $region27: #{tpu_custom_call.1} parent=11 // pred_region
          _
        $region28: #{tpu_custom_call.1} parent=11 // pred_fallthru
          _
        // Predicated region
        $region29: #{tpu_custom_call.1} parent=11 // pred_check
          %p229 = pneg %p145
        $region30: #{tpu_custom_call.1} parent=11 // pred_check_branch
          %231 = sbr.rel (%p229) target = $region32
        $region31: #{tpu_custom_call.1} parent=11 // pred_region
          _
        $region32: #{tpu_custom_call.1} parent=11 // pred_fallthru
          _
        // Predicated region
        $region33: #{tpu_custom_call.1} parent=11 // pred_check
          %p232 = pneg %p166
        $region34: #{tpu_custom_call.1} parent=11 // pred_check_branch
          %234 = sbr.rel (%p232) target = $region36
        $region35: #{tpu_custom_call.1} parent=11 // pred_region
          _
        $region36: #{tpu_custom_call.1} parent=11 // pred_fallthru
          _
      $region12: #{tpu_custom_call.1} parent=5 // pred_fallthru
        _
      %p235 = scmp.lt.s32.totalorder %s14, 2
      // Predicated region
      $region37: #{tpu_custom_call.1} parent=5 // pred_check
        %p236 = pneg %p235
      $region38: #{tpu_custom_call.1} parent=5 // pred_check_branch
        %238 = sbr.rel (%p236) target = $region40
      $region39: #{tpu_custom_call.1} parent=5 // pred_region
        // Predicated region
        $region41: #{tpu_custom_call.1} parent=39 // pred_check
          %p239 = pneg %p34
        $region42: #{tpu_custom_call.1} parent=39 // pred_check_branch
          %241 = sbr.rel (%p239) target = $region44
        $region43: #{tpu_custom_call.1} parent=39 // pred_region
          %p242 = scmp.lt.s32.totalorder %s14, 1
          %s243 = scalar_select %p242, %s14, 1
          %s244 = smul.addr %s243, 8
          %s245 = scalar_lea.vmem %s0, %s244
        $region44: #{tpu_custom_call.1} parent=39 // pred_fallthru
          _
      $region40: #{tpu_custom_call.1} parent=5 // pred_fallthru
        _
      %p246 = scmp.le.s32.totalorder 1, %s14
      %p247 = scmp.lt.s32.totalorder %s14, 3
      %p248 = pnand %p246, %p247
      %p249 = pneg %p248
      // Predicated region
      $region45: #{tpu_custom_call.1} parent=5 // pred_check
        _
      $region46: #{tpu_custom_call.1} parent=5 // pred_check_branch
        %251 = sbr.rel (%p248) target = $region48
      $region47: #{tpu_custom_call.1} parent=5 // pred_region
        %s252 = ssub.s32 %s14, 1
        // Predicated region
        $region49: #{tpu_custom_call.1} parent=47 // pred_check
          %p253 = pneg %p103
        $region50: #{tpu_custom_call.1} parent=47 // pred_check_branch
          %255 = sbr.rel (%p253) target = $region52
        $region51: #{tpu_custom_call.1} parent=47 // pred_region
          %256 = dma.done [#allocation3], 4096
        $region52: #{tpu_custom_call.1} parent=47 // pred_fallthru
          _
        %p257 = scmp.lt.s32.totalorder %s19, 1
        %s258 = scalar_select %p257, %s19, 1
        %s259 = smul.addr %s258, 8
        %s260 = scalar_lea.vmem %s0, %s259
        %p261 = pneg %p40
        %p262 = pneg %p37
        %p263 = pneg %p61
        %p264 = pneg %p58
        %p265 = pneg %p82
        %p266 = pneg %p79
        %p267 = pneg %p103
        %p268 = pneg %p100
        %p269 = pneg %p124
        %p270 = pneg %p121
        %p271 = pneg %p145
        %p272 = pneg %p142
        %p273 = pneg %p166
        %p274 = pneg %p163
        %p275 = pneg %p192
        %p276 = pneg %p189
        %p277 = scmp.lt.s32.totalorder %s19, 1
        %s278 = scalar_select %p277, %s19, 1
        %s279 = smul.addr %s278, 8
        %s280 = scalar_lea.vmem %s7, %s279
        %p281 = scmp.lt.s32.totalorder %s19, 1
        %s282 = scalar_select %p281, %s19, 1
        %s283 = smul.addr %s282, 8
        %s284 = scalar_lea.vmem %s0, %s283
        %p285 = scmp.lt.s32.totalorder %s19, 1
        %s286 = scalar_select %p285, %s19, 1
        %s287 = smul.addr %s286, 8
        %s288 = scalar_lea.vmem %s7, %s287
        %v289 = vld [vmem:[%s284] sm:$0xff]
        %v290 = vld [vmem:[%s1] sm:$0xf]
        %v291 = vld [vmem:[%s2] sm:$0x1]
        %v293 = vlaneseq
        %v294 = vshrl.u32 %v293, 7
        %v295 = vsub.s32 0, %v294
        %v296 = vrot.slane %v291, %v295
        %vm298 = vcmask 31744
        %v300 = vsel %vm298, %v289, 0
        %vm302 = vcmask 1043456
        %v304 = vsel %vm302, %v290, 0
        %306 = vmatprep.subr.mxu0 0.0
        %307 = vmatpush1.msra.mxu0 0.0
        %308 = vmatprep.subr.mxu0 0.0
        %309 = vmatpush1.msra.mxu0 0.0
        %310 = vmatprep.subr.mxu0 0.0
        %311 = vmatpush1.msra.mxu0 0.0
        %312 = vmatprep.subr.mxu0 0.0
        %313 = vmatpush1.msra.mxu0 0.0
        %314 = vmatprep.subr.mxu0 0.0
        %315 = vmatpush1.msra.mxu0 0.0
        %316 = vmatprep.subr.mxu0 0.0
        %317 = vmatpush1.msra.mxu0 0.0
        %318 = vmatprep.subr.mxu0 0.0
        %319 = vmatpush1.msra.mxu0 0.0
        %320 = vmatprep.subr.mxu0 0.0
        %321 = vmatpush1.msra.mxu0 0.0
        %322 = vmatprep.subr.mxu0 0.0
        %323 = vmatpush1.msra.mxu0 0.0
        %324 = vmatprep.subr.mxu0 0.0
        %325 = vmatpush1.msra.mxu0 0.0
        %326 = vmatprep.subr.mxu0 0.0
        %327 = vmatpush1.msra.mxu0 0.0
        %328 = vmatprep.subr.mxu0 0.0
        %329 = vmatpush1.msra.mxu0 0.0
        %330 = vmatprep.subr.mxu0 0.0
        %331 = vmatpush1.msra.mxu0 0.0
        %332 = vmatprep.subr.mxu0 0.0
        %333 = vmatpush1.msra.mxu0 0.0
        %334 = vmatprep.subr.mxu0 0.0
        %335 = vmatpush1.msra.mxu0 0.0
        %336 = vmatprep.subr.mxu0 0.0
        %337 = vmatpush1.msra.mxu0 %v304
        %338 = vmatprep.subr.mxu0 0.0
        %339 = vmatpush2.msra.mxu0 0.0
        %340 = vmatprep.subr.mxu0 0.0
        %341 = vmatpush2.msra.mxu0 0.0
        %342 = vmatprep.subr.mxu0 0.0
        %343 = vmatpush2.msra.mxu0 0.0
        %344 = vmatprep.subr.mxu0 0.0
        %345 = vmatpush2.msra.mxu0 0.0
        %346 = vmatprep.subr.mxu0 0.0
        %347 = vmatpush2.msra.mxu0 0.0
        %348 = vmatprep.subr.mxu0 0.0
        %349 = vmatpush2.msra.mxu0 0.0
        %350 = vmatprep.subr.mxu0 0.0
        %351 = vmatpush2.msra.mxu0 0.0
        %352 = vmatprep.subr.mxu0 0.0
        %353 = vmatpush2.msra.mxu0 0.0
        %354 = vmatprep.subr.mxu0 0.0
        %355 = vmatpush2.msra.mxu0 0.0
        %356 = vmatprep.subr.mxu0 0.0
        %357 = vmatpush2.msra.mxu0 0.0
        %358 = vmatprep.subr.mxu0 0.0
        %359 = vmatpush2.msra.mxu0 0.0
        %360 = vmatprep.subr.mxu0 0.0
        %361 = vmatpush2.msra.mxu0 0.0
        %362 = vmatprep.subr.mxu0 0.0
        %363 = vmatpush2.msra.mxu0 0.0
        %364 = vmatprep.subr.mxu0 0.0
        %365 = vmatpush2.msra.mxu0 0.0
        %366 = vmatprep.subr.mxu0 0.0
        %367 = vmatpush2.msra.mxu0 0.0
        %368 = vmatprep.subr.mxu0 0.0
        %369 = vmatpush2.msra.mxu0 0.0
        %370 = vmatprep.mubr.f32.mxu0 0.0
        %371 = vmatmul.mubr.f32.gmra.mxu0 %v300
        %v372 = vpop.f32.mrf.mxu0
        %v373 = vadd.f32 %v296, %v372
        %v374 = vpop.f32.mrf.mxu0
        %375 = vdwg.mxu0
        %vm376 = vcmp.gt.f32.partialorder %v373, 0.0
        %v377 = vmul.f32 %v373, 1.442695
        %v378 = vpow.pop %v377
        %v379 = vsub.f32 %v378, 1.0
        %v380 = vsel %vm376, %v373, %v379
        %v381 = vld [vmem:[#allocation2] sm:$0xff]
        %v382 = vld [vmem:[#allocation2 + $0x8] sm:$0xff]
        %v383 = vld [vmem:[#allocation2 + $0x10] sm:$0xff]
        %v384 = vld [vmem:[#allocation2 + $0x18] sm:$0xff]
        %v385 = vld [vmem:[#allocation2 + $0x20] sm:$0xff]
        %v386 = vld [vmem:[#allocation2 + $0x28] sm:$0xff]
        %v387 = vld [vmem:[#allocation2 + $0x30] sm:$0xff]
        %v388 = vld [vmem:[#allocation2 + $0x38] sm:$0xff]
        %v389 = vld [vmem:[#allocation2 + $0x40] sm:$0xff]
        %v390 = vld [vmem:[#allocation2 + $0x48] sm:$0xff]
        %v391 = vld [vmem:[#allocation2 + $0x50] sm:$0xff]
        %v392 = vld [vmem:[#allocation2 + $0x58] sm:$0xff]
        %v393 = vld [vmem:[#allocation2 + $0x60] sm:$0xff]
        %v394 = vld [vmem:[#allocation2 + $0x68] sm:$0xff]
        %v395 = vld [vmem:[#allocation2 + $0x70] sm:$0xff]
        %v396 = vld [vmem:[#allocation2 + $0x78] sm:$0xff]
        %v397 = vld [vmem:[%s4] sm:$0x1]
        %v399 = vlaneseq
        %v400 = vshrl.u32 %v399, 7
        %v401 = vsub.s32 0, %v400
        %v402 = vrot.slane %v397, %v401
        %404 = vmatprep.subr.mxu0 0.0
        %405 = vmatpush1.msra.mxu0 %v396
        %406 = vmatprep.subr.mxu0 0.0
        %407 = vmatpush1.msra.mxu0 %v395
        %408 = vmatprep.subr.mxu0 0.0
        %409 = vmatpush1.msra.mxu0 %v394
        %410 = vmatprep.subr.mxu0 0.0
        %411 = vmatpush1.msra.mxu0 %v393
        %412 = vmatprep.subr.mxu0 0.0
        %413 = vmatpush1.msra.mxu0 %v392
        %414 = vmatprep.subr.mxu0 0.0
        %415 = vmatpush1.msra.mxu0 %v391
        %416 = vmatprep.subr.mxu0 0.0
        %417 = vmatpush1.msra.mxu0 %v390
        %418 = vmatprep.subr.mxu0 0.0
        %419 = vmatpush1.msra.mxu0 %v389
        %420 = vmatprep.subr.mxu0 0.0
        %421 = vmatpush1.msra.mxu0 %v388
        %422 = vmatprep.subr.mxu0 0.0
        %423 = vmatpush1.msra.mxu0 %v387
        %424 = vmatprep.subr.mxu0 0.0
        %425 = vmatpush1.msra.mxu0 %v386
        %426 = vmatprep.subr.mxu0 0.0
        %427 = vmatpush1.msra.mxu0 %v385
        %428 = vmatprep.subr.mxu0 0.0
        %429 = vmatpush1.msra.mxu0 %v384
        %430 = vmatprep.subr.mxu0 0.0
        %431 = vmatpush1.msra.mxu0 %v383
        %432 = vmatprep.subr.mxu0 0.0
        %433 = vmatpush1.msra.mxu0 %v382
        %434 = vmatprep.subr.mxu0 0.0
        %435 = vmatpush1.msra.mxu0 %v381
        %436 = vmatprep.subr.mxu0 0.0
        %437 = vmatpush2.msra.mxu0 0.0
        %438 = vmatprep.subr.mxu0 0.0
        %439 = vmatpush2.msra.mxu0 0.0
        %440 = vmatprep.subr.mxu0 0.0
        %441 = vmatpush2.msra.mxu0 0.0
        %442 = vmatprep.subr.mxu0 0.0
        %443 = vmatpush2.msra.mxu0 0.0
        %444 = vmatprep.subr.mxu0 0.0
        %445 = vmatpush2.msra.mxu0 0.0
        %446 = vmatprep.subr.mxu0 0.0
        %447 = vmatpush2.msra.mxu0 0.0
        %448 = vmatprep.subr.mxu0 0.0
        %449 = vmatpush2.msra.mxu0 0.0
        %450 = vmatprep.subr.mxu0 0.0
        %451 = vmatpush2.msra.mxu0 0.0
        %452 = vmatprep.subr.mxu0 0.0
        %453 = vmatpush2.msra.mxu0 0.0
        %454 = vmatprep.subr.mxu0 0.0
        %455 = vmatpush2.msra.mxu0 0.0
        %456 = vmatprep.subr.mxu0 0.0
        %457 = vmatpush2.msra.mxu0 0.0
        %458 = vmatprep.subr.mxu0 0.0
        %459 = vmatpush2.msra.mxu0 0.0
        %460 = vmatprep.subr.mxu0 0.0
        %461 = vmatpush2.msra.mxu0 0.0
        %462 = vmatprep.subr.mxu0 0.0
        %463 = vmatpush2.msra.mxu0 0.0
        %464 = vmatprep.subr.mxu0 0.0
        %465 = vmatpush2.msra.mxu0 0.0
        %466 = vmatprep.subr.mxu0 0.0
        %467 = vmatpush2.msra.mxu0 0.0
        %468 = vmatprep.mubr.f32.mxu0 0.0
        %469 = vmatmul.mubr.f32.gmra.mxu0 %v380
        %v470 = vpop.f32.mrf.mxu0
        %v471 = vadd.f32 %v402, %v470
        %v472 = vpop.f32.mrf.mxu0
        %473 = vdwg.mxu0
        %vm474 = vcmp.gt.f32.partialorder %v471, 0.0
        %v475 = vmul.f32 %v471, 1.442695
        %v476 = vpow.pop %v475
        %v477 = vsub.f32 %v476, 1.0
        %v478 = vsel %vm474, %v471, %v477
        %v479 = vadd.f32 %v380, %v478
        %s480 = scalar_lea.vmem [#allocation2], 128
        %v481 = vld [vmem:[%s480] sm:$0xff]
        %v482 = vld [vmem:[%s480 + $0x8] sm:$0xff]
        %v483 = vld [vmem:[%s480 + $0x10] sm:$0xff]
        %v484 = vld [vmem:[%s480 + $0x18] sm:$0xff]
        %v485 = vld [vmem:[%s480 + $0x20] sm:$0xff]
        %v486 = vld [vmem:[%s480 + $0x28] sm:$0xff]
        %v487 = vld [vmem:[%s480 + $0x30] sm:$0xff]
        %v488 = vld [vmem:[%s480 + $0x38] sm:$0xff]
        %v489 = vld [vmem:[%s480 + $0x40] sm:$0xff]
        %v490 = vld [vmem:[%s480 + $0x48] sm:$0xff]
        %v491 = vld [vmem:[%s480 + $0x50] sm:$0xff]
        %v492 = vld [vmem:[%s480 + $0x58] sm:$0xff]
        %v493 = vld [vmem:[%s480 + $0x60] sm:$0xff]
        %v494 = vld [vmem:[%s480 + $0x68] sm:$0xff]
        %v495 = vld [vmem:[%s480 + $0x70] sm:$0xff]
        %v496 = vld [vmem:[%s480 + $0x78] sm:$0xff]
        %s497 = scalar_lea.vmem %s4, 1
        %v498 = vld [vmem:[%s497] sm:$0x1]
        %v500 = vlaneseq
        %v501 = vshrl.u32 %v500, 7
        %v502 = vsub.s32 0, %v501
        %v503 = vrot.slane %v498, %v502
        %505 = vmatprep.subr.mxu0 0.0
        %506 = vmatpush1.msra.mxu0 %v496
        %507 = vmatprep.subr.mxu0 0.0
        %508 = vmatpush1.msra.mxu0 %v495
        %509 = vmatprep.subr.mxu0 0.0
        %510 = vmatpush1.msra.mxu0 %v494
        %511 = vmatprep.subr.mxu0 0.0
        %512 = vmatpush1.msra.mxu0 %v493
        %513 = vmatprep.subr.mxu0 0.0
        %514 = vmatpush1.msra.mxu0 %v492
        %515 = vmatprep.subr.mxu0 0.0
        %516 = vmatpush1.msra.mxu0 %v491
        %517 = vmatprep.subr.mxu0 0.0
        %518 = vmatpush1.msra.mxu0 %v490
        %519 = vmatprep.subr.mxu0 0.0
        %520 = vmatpush1.msra.mxu0 %v489
        %521 = vmatprep.subr.mxu0 0.0
        %522 = vmatpush1.msra.mxu0 %v488
        %523 = vmatprep.subr.mxu0 0.0
        %524 = vmatpush1.msra.mxu0 %v487
        %525 = vmatprep.subr.mxu0 0.0
        %526 = vmatpush1.msra.mxu0 %v486
        %527 = vmatprep.subr.mxu0 0.0
        %528 = vmatpush1.msra.mxu0 %v485
        %529 = vmatprep.subr.mxu0 0.0
        %530 = vmatpush1.msra.mxu0 %v484
        %531 = vmatprep.subr.mxu0 0.0
        %532 = vmatpush1.msra.mxu0 %v483
        %533 = vmatprep.subr.mxu0 0.0
        %534 = vmatpush1.msra.mxu0 %v482
        %535 = vmatprep.subr.mxu0 0.0
        %536 = vmatpush1.msra.mxu0 %v481
        %537 = vmatprep.subr.mxu0 0.0
        %538 = vmatpush2.msra.mxu0 0.0
        %539 = vmatprep.subr.mxu0 0.0
        %540 = vmatpush2.msra.mxu0 0.0
        %541 = vmatprep.subr.mxu0 0.0
        %542 = vmatpush2.msra.mxu0 0.0
        %543 = vmatprep.subr.mxu0 0.0
        %544 = vmatpush2.msra.mxu0 0.0
        %545 = vmatprep.subr.mxu0 0.0
        %546 = vmatpush2.msra.mxu0 0.0
        %547 = vmatprep.subr.mxu0 0.0
        %548 = vmatpush2.msra.mxu0 0.0
        %549 = vmatprep.subr.mxu0 0.0
        %550 = vmatpush2.msra.mxu0 0.0
        %551 = vmatprep.subr.mxu0 0.0
        %552 = vmatpush2.msra.mxu0 0.0
        %553 = vmatprep.subr.mxu0 0.0
        %554 = vmatpush2.msra.mxu0 0.0
        %555 = vmatprep.subr.mxu0 0.0
        %556 = vmatpush2.msra.mxu0 0.0
        %557 = vmatprep.subr.mxu0 0.0
        %558 = vmatpush2.msra.mxu0 0.0
        %559 = vmatprep.subr.mxu0 0.0
        %560 = vmatpush2.msra.mxu0 0.0
        %561 = vmatprep.subr.mxu0 0.0
        %562 = vmatpush2.msra.mxu0 0.0
        %563 = vmatprep.subr.mxu0 0.0
        %564 = vmatpush2.msra.mxu0 0.0
        %565 = vmatprep.subr.mxu0 0.0
        %566 = vmatpush2.msra.mxu0 0.0
        %567 = vmatprep.subr.mxu0 0.0
        %568 = vmatpush2.msra.mxu0 0.0
        %569 = vmatprep.mubr.f32.mxu0 0.0
        %570 = vmatmul.mubr.f32.gmra.mxu0 %v479
        %v571 = vpop.f32.mrf.mxu0
        %v572 = vadd.f32 %v503, %v571
        %v573 = vpop.f32.mrf.mxu0
        %574 = vdwg.mxu0
        %vm575 = vcmp.gt.f32.partialorder %v572, 0.0
        %v576 = vmul.f32 %v572, 1.442695
        %v577 = vpow.pop %v576
        %v578 = vsub.f32 %v577, 1.0
        %v579 = vsel %vm575, %v572, %v578
        %v580 = vadd.f32 %v479, %v579
        %v581 = vld [vmem:[%s5] sm:$0xff]
        %v582 = vld [vmem:[%s5 + $0x8] sm:$0xff]
        %v583 = vld [vmem:[%s5 + $0x10] sm:$0xff]
        %v584 = vld [vmem:[%s5 + $0x18] sm:$0xff]
        %v585 = vld [vmem:[%s5 + $0x20] sm:$0xff]
        %v586 = vld [vmem:[%s5 + $0x28] sm:$0xff]
        %v587 = vld [vmem:[%s5 + $0x30] sm:$0xff]
        %v588 = vld [vmem:[%s5 + $0x38] sm:$0xff]
        %v589 = vld [vmem:[%s5 + $0x40] sm:$0xff]
        %v590 = vld [vmem:[%s5 + $0x48] sm:$0xff]
        %v591 = vld [vmem:[%s5 + $0x50] sm:$0xff]
        %v592 = vld [vmem:[%s5 + $0x58] sm:$0xff]
        %v593 = vld [vmem:[%s5 + $0x60] sm:$0xff]
        %v594 = vld [vmem:[%s5 + $0x68] sm:$0xff]
        %v595 = vld [vmem:[%s5 + $0x70] sm:$0xff]
        %v596 = vld [vmem:[%s5 + $0x78] sm:$0xff]
        %v597 = vld [vmem:[%s6] sm:$0x1]
        %v599 = vlaneseq
        %v600 = vshrl.u32 %v599, 7
        %v601 = vsub.s32 0, %v600
        %v602 = vrot.slane %v597, %v601
        %604 = vmatprep.subr.mxu0 0.0
        %605 = vmatpush1.msra.mxu0 %v596
        %606 = vmatprep.subr.mxu0 0.0
        %607 = vmatpush1.msra.mxu0 %v595
        %608 = vmatprep.subr.mxu0 0.0
        %609 = vmatpush1.msra.mxu0 %v594
        %610 = vmatprep.subr.mxu0 0.0
        %611 = vmatpush1.msra.mxu0 %v593
        %612 = vmatprep.subr.mxu0 0.0
        %613 = vmatpush1.msra.mxu0 %v592
        %614 = vmatprep.subr.mxu0 0.0
        %615 = vmatpush1.msra.mxu0 %v591
        %616 = vmatprep.subr.mxu0 0.0
        %617 = vmatpush1.msra.mxu0 %v590
        %618 = vmatprep.subr.mxu0 0.0
        %619 = vmatpush1.msra.mxu0 %v589
        %620 = vmatprep.subr.mxu0 0.0
        %621 = vmatpush1.msra.mxu0 %v588
        %622 = vmatprep.subr.mxu0 0.0
        %623 = vmatpush1.msra.mxu0 %v587
        %624 = vmatprep.subr.mxu0 0.0
        %625 = vmatpush1.msra.mxu0 %v586
        %626 = vmatprep.subr.mxu0 0.0
        %627 = vmatpush1.msra.mxu0 %v585
        %628 = vmatprep.subr.mxu0 0.0
        %629 = vmatpush1.msra.mxu0 %v584
        %630 = vmatprep.subr.mxu0 0.0
        %631 = vmatpush1.msra.mxu0 %v583
        %632 = vmatprep.subr.mxu0 0.0
        %633 = vmatpush1.msra.mxu0 %v582
        %634 = vmatprep.subr.mxu0 0.0
        %635 = vmatpush1.msra.mxu0 %v581
        %636 = vmatprep.subr.mxu0 0.0
        %637 = vmatpush2.msra.mxu0 0.0
        %638 = vmatprep.subr.mxu0 0.0
        %639 = vmatpush2.msra.mxu0 0.0
        %640 = vmatprep.subr.mxu0 0.0
        %641 = vmatpush2.msra.mxu0 0.0
        %642 = vmatprep.subr.mxu0 0.0
        %643 = vmatpush2.msra.mxu0 0.0
        %644 = vmatprep.subr.mxu0 0.0
        %645 = vmatpush2.msra.mxu0 0.0
        %646 = vmatprep.subr.mxu0 0.0
        %647 = vmatpush2.msra.mxu0 0.0
        %648 = vmatprep.subr.mxu0 0.0
        %649 = vmatpush2.msra.mxu0 0.0
        %650 = vmatprep.subr.mxu0 0.0
        %651 = vmatpush2.msra.mxu0 0.0
        %652 = vmatprep.subr.mxu0 0.0
        %653 = vmatpush2.msra.mxu0 0.0
        %654 = vmatprep.subr.mxu0 0.0
        %655 = vmatpush2.msra.mxu0 0.0
        %656 = vmatprep.subr.mxu0 0.0
        %657 = vmatpush2.msra.mxu0 0.0
        %658 = vmatprep.subr.mxu0 0.0
        %659 = vmatpush2.msra.mxu0 0.0
        %660 = vmatprep.subr.mxu0 0.0
        %661 = vmatpush2.msra.mxu0 0.0
        %662 = vmatprep.subr.mxu0 0.0
        %663 = vmatpush2.msra.mxu0 0.0
        %664 = vmatprep.subr.mxu0 0.0
        %665 = vmatpush2.msra.mxu0 0.0
        %666 = vmatprep.subr.mxu0 0.0
        %667 = vmatpush2.msra.mxu0 0.0
        %668 = vmatprep.mubr.f32.mxu0 0.0
        %669 = vmatmul.mubr.f32.gmra.mxu0 %v580
        %v670 = vpop.f32.mrf.mxu0
        %v671 = vadd.f32 %v602, %v670
        %v672 = vpop.f32.mrf.mxu0
        %673 = vdwg.mxu0
        %vm674 = vcmask 64512
        %675 = vst.msk [vmem:[%s288] sm:$0xff] %vm674, %v671
        %p676 = scmp.lt.s32.totalorder %s19, 1
        %s677 = scalar_select %p676, %s19, 1
        %s678 = smul.addr %s677, 8
        %s679 = scalar_lea.vmem %s7, %s678
        // Predicated region
        $region53: #{tpu_custom_call.1} parent=47 // pred_check
          %p680 = pneg %p189
        $region54: #{tpu_custom_call.1} parent=47 // pred_check_branch
          %682 = sbr.rel (%p680) target = $region56
        $region55: #{tpu_custom_call.1} parent=47 // pred_region
          _
        $region56: #{tpu_custom_call.1} parent=47 // pred_fallthru
          _
      $region48: #{tpu_custom_call.1} parent=5 // pred_fallthru
        _
      %p683 = scmp.le.s32.totalorder 2, %s14
      // Predicated region
      $region57: #{tpu_custom_call.1} parent=5 // pred_check
        %p684 = pneg %p683
      $region58: #{tpu_custom_call.1} parent=5 // pred_check_branch
        %686 = sbr.rel (%p684) target = $region60
      $region59: #{tpu_custom_call.1} parent=5 // pred_region
        %s687 = ssub.s32 %s14, 2
        // Predicated region
        $region61: #{tpu_custom_call.1} parent=59 // pred_check
          %p688 = pneg %p195
        $region62: #{tpu_custom_call.1} parent=59 // pred_check_branch
          %690 = sbr.rel (%p688) target = $region64
        $region63: #{tpu_custom_call.1} parent=59 // pred_region
          %p691 = scmp.lt.s32.totalorder %s20, 1
          %s692 = scalar_select %p691, %s20, 1
          %s693 = smul.addr %s692, 8
          %s694 = scalar_lea.vmem %s7, %s693
        $region64: #{tpu_custom_call.1} parent=59 // pred_fallthru
          _
      $region60: #{tpu_custom_call.1} parent=5 // pred_fallthru
        _
    $region6: #{tpu_custom_call.1} parent=1 // loop_footer
      %s18 = sadd.s32 1, %s14
    $region7: #{tpu_custom_call.1} parent=1 // loop_footer_branch
      %13 = sbr.rel target = $region3
    $region8: #{tpu_custom_call.1} parent=1 // loop_exit
      _
    %695 = vsyncpa [#allocation3], 1
    %s696 = scalar_lea.sflag [#allocation3], 1
    %697 = vsyncpa %s696, 1

</llo_original>
